<compile_context>
chip_gen: v5e
topology: v5e:2x2
jax: 0.10.0
libtpu: 0.0.40
codegen_flags: <defaults>
</compile_context>

<pallas_src>
import functools

import jax
import jax.numpy as jnp
from jax.experimental import pallas as pl
from jax.experimental.pallas import tpu as pltpu

BN_EPS = 1e-5


def _vmem_limit_bytes():
    """Generation-aware VMEM budget: ~3/4 of physical, capped at 100 MiB.

    Falls back to 48 MiB (safe on v7x's 64 MiB parts) if the hardware query
    is unavailable.
    """
    default = 48 * 1024 * 1024
    try:
        info = pltpu.get_tpu_info()
        cap = getattr(info, "vmem_capacity_bytes", None)
        if not cap:
            return default
        return int(min((cap * 3) // 4, 100 * 1024 * 1024))
    except Exception:  # pragma: no cover - non-TPU / old runtime fallback
        return default


VMEM_LIMIT_BYTES = _vmem_limit_bytes()


def _pick_tile(dim, preferred):
    """Largest divisor of `dim` that is a multiple of 256 (preferred for the
    v6e/v7x 2x256^2 MXU) or 128, and <= `preferred`.

    Falls back to the full dim (always a legal block shape) for unaligned
    sizes, so arbitrary dims never trip an assert.
    """
    for unit in (256, 128):
        best = None
        t = unit
        while t <= min(preferred, dim):
            if dim % t == 0:
                best = t
            t += unit
        if best is not None:
            return best
    # TODO(synk): a large un-128-aligned dim falls back to a single full-dim
    # block; at resnet-scale that could exceed the VMEM budget.
    return dim


def _pad_batch(x, multiple=16):
    """Zero-pad the leading (batch) dim up to a multiple of 16 rows.

    16 rows = one packed bf16 vreg worth of sublanes, avoiding half-empty
    packed sublanes and masked stores.
    """
    b = x.shape[0]
    bp = max(multiple, ((b + multiple - 1) // multiple) * multiple)
    if bp == b:
        return x
    pad = [(0, bp - b)] + [(0, 0)] * (x.ndim - 1)
    return jnp.pad(x, pad)


# ----------------------------------------------------------------------------
# Pallas kernel 1: bias-free linear (stand-in encoder).
#   grid = (N tiles [parallel], K reduction tiles [arbitrary])
#   bf16 inputs, f32 accumulation directly into the resident output block.
#   A bf16 copy of the output is emitted on the final reduction step so the
#   downstream fused MLP can consume it without a wrapper-side cast pass.
# ----------------------------------------------------------------------------
def _linear_kernel(x_ref, w_ref, o_ref, o_bf16_ref):
    k = pl.program_id(1)

    @pl.when(k == 0)
    def _():
        o_ref[...] = jnp.zeros_like(o_ref)

    o_ref[...] += jnp.dot(
        x_ref[...], w_ref[...], preferred_element_type=jnp.float32
    )

    @pl.when(k == pl.num_programs(1) - 1)
    def _():
        o_bf16_ref[...] = o_ref[...].astype(jnp.bfloat16)


def pallas_linear(x, w, *, tk_pref=2048, tn_pref=2048):
    """x: (Bp, K) bf16, w: (K, N) bf16 -> ((Bp, N) f32, (Bp, N) bf16)."""
    B, K = x.shape
    K2, N = w.shape
    assert K == K2
    tk = _pick_tile(K, tk_pref)
    tn = _pick_tile(N, tn_pref)
    return pl.pallas_call(
        _linear_kernel,
        out_shape=(jax.ShapeDtypeStruct((B, N), jnp.float32),
                   jax.ShapeDtypeStruct((B, N), jnp.bfloat16)),
        grid_spec=pltpu.PrefetchScalarGridSpec(
            num_scalar_prefetch=0,
            grid=(N // tn, K // tk),
            in_specs=[
                pl.BlockSpec((B, tk), lambda n, k: (0, k)),
                pl.BlockSpec((tk, tn), lambda n, k: (k, n)),
            ],
            out_specs=[
                pl.BlockSpec((B, tn), lambda n, k: (0, n)),
                pl.BlockSpec((B, tn), lambda n, k: (0, n)),
            ],
        ),
        compiler_params=pltpu.CompilerParams(
            dimension_semantics=("parallel", "arbitrary"),
            vmem_limit_bytes=VMEM_LIMIT_BYTES,
        ),
    )(x, w)


# ----------------------------------------------------------------------------
# Pallas kernel 2: fused projector + predictor.
#   stage 0: z = ReLU(BN(y @ W1p)) @ W2p + b2p   (accumulated into z_ref)
#   stage 1: h = ReLU(BN(z @ W1q)) @ W2q + b2q   (reads z_ref from VMEM)
#   grid = (stage, hidden tiles); BOTH axes MUST stay "arbitrary"
#   (sequential): stage 1 reads the completed, VMEM-resident z_ref.
#   Do NOT mark either axis "parallel" and do NOT tile the batch without
#   adding a cross-tile BN stats reduction.
#   BatchNorm uses batch statistics (PyTorch training mode, biased variance,
#   eps=1e-5), masked to the logical batch so padded rows never pollute the
#   stats. Biases are folded into the accumulator init.
#   NOTE: padded rows of z/h contain bias-derived nonzero values; they are
#   sliced off by the caller and never feed BN stats.
# ----------------------------------------------------------------------------
def _fused_mlp_kernel(y_ref, mask_ref,
                      w1p_ref, gp_ref, bp_ref, w2p_ref, b2p_ref,
                      w1q_ref, gq_ref, bq_ref, w2q_ref, b2q_ref,
                      z_ref, h_ref):
    s = pl.program_id(0)
    j = pl.program_id(1)
    m = mask_ref[...]  # (Bp, 1) f32, = (row < logical_B) / logical_B

    @pl.when((s == 0) & (j == 0))
    def _():
        z_ref[...] = jnp.broadcast_to(b2p_ref[...], z_ref.shape)

    @pl.when((s == 1) & (j == 0))
    def _():
        h_ref[...] = jnp.broadcast_to(b2q_ref[...], h_ref.shape)

    def bn_relu(hid, gamma, beta):
        # One-pass masked batch stats (biased variance), folded affine + ReLU.
        mean = jnp.sum(hid * m, axis=0, keepdims=True)
        ex2 = jnp.sum(hid * hid * m, axis=0, keepdims=True)
        var = jnp.maximum(ex2 - mean * mean, 0.0)
        a = gamma * jax.lax.rsqrt(var + BN_EPS)
        b = beta - mean * a
        return jnp.maximum(hid * a + b, 0.0)

    @pl.when(s == 0)
    def _():
        hid = jnp.dot(y_ref[...], w1p_ref[...],
                      preferred_element_type=jnp.float32)
        hid = bn_relu(hid, gp_ref[...], bp_ref[...])
        z_ref[...] += jnp.dot(hid.astype(jnp.bfloat16), w2p_ref[...],
                              preferred_element_type=jnp.float32)

    @pl.when(s == 1)
    def _():
        x = z_ref[...].astype(jnp.bfloat16)  # z is complete and VMEM-resident
        hid = jnp.dot(x, w1q_ref[...],
                      preferred_element_type=jnp.float32)
        hid = bn_relu(hid, gq_ref[...], bq_ref[...])
        h_ref[...] += jnp.dot(hid.astype(jnp.bfloat16), w2q_ref[...],
                              preferred_element_type=jnp.float32)


def pallas_projector_predictor(y_pad_bf16, proj, pred, *, logical_batch,
                               th_pref=1024):
    """y_pad_bf16: (Bp, E) bf16. Returns (z_pad, h_pad), each (Bp, O) f32."""
    Bp, E = y_pad_bf16.shape
    E2, H = proj["w1"].shape
    H2, O = proj["w2"].shape
    assert E == E2 and H == H2
    assert pred["w1"].shape == (O, H) and pred["w2"].shape == (H, O)
    th = _pick_tile(H, th_pref)
    nj = H // th

    bn_mask = (
        (jnp.arange(Bp) < logical_batch).astype(jnp.float32)
        / jnp.float32(logical_batch)
    ).reshape(Bp, 1)

    # Projector weights advance during stage 0 and stay pinned to their LAST
    # visited block (nj-1) during stage 1, avoiding a dead DMA back to block 0
    # at the stage transition. Predictor weights sit on block 0 during stage 0
    # (a useful prefetch of their first stage-1 block) and advance in stage 1.
    def proj_col(s, j):
        return (0, j * (1 - s) + (nj - 1) * s)

    def proj_row(s, j):
        return (j * (1 - s) + (nj - 1) * s, 0)

    def pred_col(s, j):
        return (0, j * s)

    def pred_row(s, j):
        return (j * s, 0)

    return pl.pallas_call(
        _fused_mlp_kernel,
        out_shape=(jax.ShapeDtypeStruct((Bp, O), jnp.float32),
                   jax.ShapeDtypeStruct((Bp, O), jnp.float32)),
        grid_spec=pltpu.PrefetchScalarGridSpec(
            num_scalar_prefetch=0,
            grid=(2, nj),
            in_specs=[
                pl.BlockSpec((Bp, E), lambda s, j: (0, 0)),   # y (bf16)
                pl.BlockSpec((Bp, 1), lambda s, j: (0, 0)),   # bn mask
                # projector params
                pl.BlockSpec((E, th), proj_col),              # w1p
                pl.BlockSpec((1, th), proj_col),              # gamma p
                pl.BlockSpec((1, th), proj_col),              # beta p
                pl.BlockSpec((th, O), proj_row),              # w2p
                pl.BlockSpec((1, O), lambda s, j: (0, 0)),    # b2p
                # predictor params
                pl.BlockSpec((O, th), pred_col),              # w1q
                pl.BlockSpec((1, th), pred_col),               # gamma q
                pl.BlockSpec((1, th), pred_col),               # beta q
                pl.BlockSpec((th, O), pred_row),              # w2q
                pl.BlockSpec((1, O), lambda s, j: (0, 0)),    # b2q
            ],
            out_specs=[
                pl.BlockSpec((Bp, O), lambda s, j: (0, 0)),   # z
                pl.BlockSpec((Bp, O), lambda s, j: (0, 0)),   # h
            ],
        ),
        compiler_params=pltpu.CompilerParams(
            # Both axes MUST remain sequential ("arbitrary"): stage 1 consumes
            # the z accumulator produced by stage 0.
            dimension_semantics=("arbitrary", "arbitrary"),
            vmem_limit_bytes=VMEM_LIMIT_BYTES,
        ),
    )(y_pad_bf16, bn_mask,
      proj["w1"], proj["gamma"], proj["beta"], proj["w2"], proj["b2"],
      pred["w1"], pred["gamma"], pred["beta"], pred["w2"], pred["b2"])


# ----------------------------------------------------------------------------
# SiameseArm in JAX, parameters initialized deterministically in-script.
# Matmul weights are stored in bf16 (MXU-native); BN affine + biases in f32.
# ----------------------------------------------------------------------------
def _uniform(key, shape, fan_in):
    bound = 1.0 / jnp.sqrt(jnp.float32(fan_in))
    return jax.random.uniform(key, shape, jnp.float32, -bound, bound)


def init_mlp_params(key, input_dim, hidden_size, output_dim):
    k1, k2, k3 = jax.random.split(key, 3)
    return {
        # Linear(input_dim, hidden, bias=False), stored (in, hidden), bf16
        "w1": _uniform(k1, (input_dim, hidden_size), input_dim).astype(
            jnp.bfloat16),
        # BatchNorm1d defaults: weight=1, bias=0
        "gamma": jnp.ones((1, hidden_size), jnp.float32),
        "beta": jnp.zeros((1, hidden_size), jnp.float32),
        # Linear(hidden, output, bias=True), stored (hidden, out), bf16
        "w2": _uniform(k2, (hidden_size, output_dim), hidden_size).astype(
            jnp.bfloat16),
        "b2": _uniform(k3, (1, output_dim), hidden_size),
    }


def init_siamese_params(key, flat_in, encoder_out_dim, proj_hidden, proj_out):
    ke, kp, kq = jax.random.split(key, 3)
    return {
        "encoder_w": _uniform(ke, (flat_in, encoder_out_dim), flat_in).astype(
            jnp.bfloat16),
        "projector": init_mlp_params(kp, encoder_out_dim, proj_hidden,
                                     proj_out),
        "predictor": init_mlp_params(kq, proj_out, proj_hidden, proj_out),
    }


def siamese_arm_forward(params, x):
    """x: (B, C, H, W) NCHW. compress_encoder_output=False (module default).

    The batch is zero-padded to >= 16 rows (one packed bf16 vreg of sublanes)
    with BatchNorm masked to the logical batch, which keeps PyTorch per-arm
    semantics exactly. Pad rows are sliced off before returning.
    """
    B = x.shape[0]
    x_flat = x.reshape(B, -1).astype(jnp.bfloat16)
    x_pad = _pad_batch(x_flat, multiple=16)          # (Bp, K), pad rows = 0

    # stand-in encoder: (Bp, C*H*W) @ (C*H*W, E) -> (Bp, E); the kernel also
    # emits a bf16 copy of y so the fused MLP needs no wrapper-side cast.
    y_pad_f32, y_pad_bf16 = pallas_linear(x_pad, params["encoder_w"])
    y_orig = y_pad_f32[:B]
    y = y_orig                                       # no compression path
    # flatten(start_dim=1) is identity on 2-D activations.

    z_pad, h_pad = pallas_projector_predictor(
        y_pad_bf16, params["projector"], params["predictor"],
        logical_batch=B)
    return y_orig, y, z_pad[:B], h_pad[:B]


# ----------------------------------------------------------------------------
# Pure-JAX reference (mirrors the bf16-input / f32-accumulate numerics).
# ----------------------------------------------------------------------------
def _mlp_ref(p, x):
    h = jnp.dot(x.astype(jnp.bfloat16), p["w1"],
                preferred_element_type=jnp.float32)
    mean = jnp.mean(h, axis=0, keepdims=True)
    var = jnp.mean((h - mean) ** 2, axis=0, keepdims=True)
    a = p["gamma"] * jax.lax.rsqrt(var + BN_EPS)
    b = p["beta"] - mean * a
    h = jnp.maximum(h * a + b, 0.0)
    return jnp.dot(h.astype(jnp.bfloat16), p["w2"],
                   preferred_element_type=jnp.float32) + p["b2"]


def _siamese_ref(params, x):
    B = x.shape[0]
    x_flat = x.reshape(B, -1).astype(jnp.bfloat16)
    y_orig = jnp.dot(x_flat, params["encoder_w"],
                     preferred_element_type=jnp.float32)
    y = y_orig
    z = _mlp_ref(params["projector"], y)
    h = _mlp_ref(params["predictor"], z)
    return y_orig, y, z, h


if __name__ == "__main__":
    # Small shapes consistent with the module (scaled down from the
    # 2048 / 4096 / 256 defaults).
    B, C, Himg, Wimg = 2, 4, 16, 16
    ENCODER_OUT = 128
    PROJ_HIDDEN = 256
    PROJ_OUT = 128

    key = jax.random.PRNGKey(0)
    kx, kp = jax.random.split(key)
    x = jax.random.normal(kx, (B, C, Himg, Wimg), jnp.float32)

    params = init_siamese_params(
        kp, C * Himg * Wimg, ENCODER_OUT, PROJ_HIDDEN, PROJ_OUT
    )

    fwd = jax.jit(functools.partial(siamese_arm_forward, params))
    y_orig, y, z, h = fwd(x)
    jax.block_until_ready((y_orig, y, z, h))

    # Verify against the pure-JAX reference.
    ry, ry2, rz, rh = _siamese_ref(params, x)
    for got, ref in ((y_orig, ry), (y, ry2), (z, rz), (h, rh)):
        assert got.shape == ref.shape
        assert jnp.allclose(got, ref, atol=1e-2, rtol=1e-2), "mismatch vs ref"

    print("KERNEL_OK")
</pallas_src>

<mosaic_0001>
module attributes {stable_mosaic.version = 11 : i64} {
  func.func @_linear_kernel(%arg0: i32, %arg1: i32, %arg2: memref<16x1024xbf16, #tpu.memory_space<vmem>>, %arg3: memref<1024x128xbf16, #tpu.memory_space<vmem>>, %arg4: memref<16x128xf32, #tpu.memory_space<vmem>>, %arg5: memref<16x128xbf16, #tpu.memory_space<vmem>>) attributes {dimension_semantics = [#tpu.dimension_semantics<parallel>, #tpu.dimension_semantics<arbitrary>], iteration_bounds = array<i64: 1, 1>, scalar_prefetch = 0 : i64, scratch_operands = 0 : i64, tpu.core_type = #tpu.core_type<tc>, window_params = [{transform_indices = @transform_0, window_bounds = array<i64: 16, 1024>}, {transform_indices = @transform_1, window_bounds = array<i64: 1024, 128>}, {transform_indices = @transform_2, window_bounds = array<i64: 16, 128>}, {transform_indices = @transform_3, window_bounds = array<i64: 16, 128>}]} {
    %c0_i32 = arith.constant 0 : i32
    %0 = arith.cmpi eq, %arg1, %c0_i32 : i32
    %1 = arith.extui %0 : i1 to i32
    %c0_i32_0 = arith.constant 0 : i32
    %2 = arith.cmpi ne, %1, %c0_i32_0 : i32
    scf.if %2 {
      %cst_10 = arith.constant 0.000000e+00 : f32
      %12 = vector.broadcast %cst_10 : f32 to vector<16x128xf32>
      %c0_11 = arith.constant 0 : index
      %c0_12 = arith.constant 0 : index
      %13 = vector.load %arg4[%c0_11, %c0_12] : memref<16x128xf32, #tpu.memory_space<vmem>>, vector<16x128xf32>
      tpu.vector_store %arg4[%c0_11, %c0_12], %12 {strides = array<i32>} : memref<16x128xf32, #tpu.memory_space<vmem>>, vector<16x128xf32>,
    } else {
    }
    %c0 = arith.constant 0 : index
    %c0_1 = arith.constant 0 : index
    %3 = vector.load %arg4[%c0, %c0_1] : memref<16x128xf32, #tpu.memory_space<vmem>>, vector<16x128xf32>
    %c0_2 = arith.constant 0 : index
    %c0_3 = arith.constant 0 : index
    %4 = vector.load %arg2[%c0_2, %c0_3] : memref<16x1024xbf16, #tpu.memory_space<vmem>>, vector<16x1024xbf16>
    %c0_4 = arith.constant 0 : index
    %c0_5 = arith.constant 0 : index
    %5 = vector.load %arg3[%c0_4, %c0_5] : memref<1024x128xbf16, #tpu.memory_space<vmem>>, vector<1024x128xbf16>
    %cst = arith.constant dense<0.000000e+00> : vector<16x128xf32>
    %6 = tpu.matmul %4, %5, %cst {dimension_numbers = #tpu.dot_dimension_numbers<[1], [0], [0], [1], [0, 0, 1, 1], [], []>} : vector<16x1024xbf16>, vector<1024x128xbf16>, vector<16x128xf32> -> vector<16x128xf32>
    %7 = arith.addf %3, %6 : vector<16x128xf32>
    %c0_6 = arith.constant 0 : index
    %c0_7 = arith.constant 0 : index
    %8 = vector.load %arg4[%c0_6, %c0_7] : memref<16x128xf32, #tpu.memory_space<vmem>>, vector<16x128xf32>
    tpu.vector_store %arg4[%c0_6, %c0_7], %7 {strides = array<i32>} : memref<16x128xf32, #tpu.memory_space<vmem>>, vector<16x128xf32>,
    %c0_i32_8 = arith.constant 0 : i32
    %9 = arith.cmpi eq, %arg1, %c0_i32_8 : i32
    %10 = arith.extui %9 : i1 to i32
    %c0_i32_9 = arith.constant 0 : i32
    %11 = arith.cmpi ne, %10, %c0_i32_9 : i32
    scf.if %11 {
      %c0_10 = arith.constant 0 : index
      %c0_11 = arith.constant 0 : index
      %12 = vector.load %arg4[%c0_10, %c0_11] : memref<16x128xf32, #tpu.memory_space<vmem>>, vector<16x128xf32>
      %13 = arith.truncf %12 : vector<16x128xf32> to vector<16x128xbf16>
      %c0_12 = arith.constant 0 : index
      %c0_13 = arith.constant 0 : index
      %14 = vector.load %arg5[%c0_12, %c0_13] : memref<16x128xbf16, #tpu.memory_space<vmem>>, vector<16x128xbf16>
      tpu.vector_store %arg5[%c0_12, %c0_13], %13 {strides = array<i32>} : memref<16x128xbf16, #tpu.memory_space<vmem>>, vector<16x128xbf16>,
    } else {
    }
    return
  }
  func.func @transform_0(%arg0: i32, %arg1: i32) -> (i32, i32) {
    %c0_i32 = arith.constant 0 : i32
    %c0_i32_0 = arith.constant 0 : i32
    return %c0_i32, %arg1 : i32, i32
  }
  func.func @transform_1(%arg0: i32, %arg1: i32) -> (i32, i32) {
    %c0_i32 = arith.constant 0 : i32
    return %arg1, %arg0 : i32, i32
  }
  func.func @transform_2(%arg0: i32, %arg1: i32) -> (i32, i32) {
    %c0_i32 = arith.constant 0 : i32
    %c0_i32_0 = arith.constant 0 : i32
    return %c0_i32, %arg0 : i32, i32
  }
  func.func @transform_3(%arg0: i32, %arg1: i32) -> (i32, i32) {
    %c0_i32 = arith.constant 0 : i32
    %c0_i32_0 = arith.constant 0 : i32
    return %c0_i32, %arg0 : i32, i32
  }
}

module attributes {stable_mosaic.version = 11 : i64} {
  func.func @_fused_mlp_kernel(%arg0: i32, %arg1: i32, %arg2: memref<16x128xbf16, #tpu.memory_space<vmem>>, %arg3: memref<16x1xf32, #tpu.memory_space<vmem>>, %arg4: memref<128x256xbf16, #tpu.memory_space<vmem>>, %arg5: memref<1x256xf32, #tpu.memory_space<vmem>>, %arg6: memref<1x256xf32, #tpu.memory_space<vmem>>, %arg7: memref<256x128xbf16, #tpu.memory_space<vmem>>, %arg8: memref<1x128xf32, #tpu.memory_space<vmem>>, %arg9: memref<128x256xbf16, #tpu.memory_space<vmem>>, %arg10: memref<1x256xf32, #tpu.memory_space<vmem>>, %arg11: memref<1x256xf32, #tpu.memory_space<vmem>>, %arg12: memref<256x128xbf16, #tpu.memory_space<vmem>>, %arg13: memref<1x128xf32, #tpu.memory_space<vmem>>, %arg14: memref<16x128xf32, #tpu.memory_space<vmem>>, %arg15: memref<16x128xf32, #tpu.memory_space<vmem>>) attributes {dimension_semantics = [#tpu.dimension_semantics<arbitrary>, #tpu.dimension_semantics<arbitrary>], iteration_bounds = array<i64: 2, 1>, scalar_prefetch = 0 : i64, scratch_operands = 0 : i64, tpu.core_type = #tpu.core_type<tc>, window_params = [{pipeline_mode = #tpu.pipeline_mode<synchronous>, transform_indices = @transform_0, window_bounds = array<i64: 16, 128>}, {pipeline_mode = #tpu.pipeline_mode<synchronous>, transform_indices = @transform_1, window_bounds = array<i64: 16, 1>}, {transform_indices = @transform_2, window_bounds = array<i64: 128, 256>}, {transform_indices = @transform_3, window_bounds = array<i64: 1, 256>}, {transform_indices = @transform_4, window_bounds = array<i64: 1, 256>}, {transform_indices = @transform_5, window_bounds = array<i64: 256, 128>}, {pipeline_mode = #tpu.pipeline_mode<synchronous>, transform_indices = @transform_6, window_bounds = array<i64: 1, 128>}, {transform_indices = @transform_7, window_bounds = array<i64: 128, 256>}, {transform_indices = @transform_8, window_bounds = array<i64: 1, 256>}, {transform_indices = @transform_9, window_bounds = array<i64: 1, 256>}, {transform_indices = @transform_10, window_bounds = array<i64: 256, 128>}, {pipeline_mode = #tpu.pipeline_mode<synchronous>, transform_indices = @transform_11, window_bounds = array<i64: 1, 128>}, {pipeline_mode = #tpu.pipeline_mode<synchronous>, transform_indices = @transform_12, window_bounds = array<i64: 16, 128>}, {pipeline_mode = #tpu.pipeline_mode<synchronous>, transform_indices = @transform_13, window_bounds = array<i64: 16, 128>}]} {
    %c0 = arith.constant 0 : index
    %c0_0 = arith.constant 0 : index
    %0 = vector.load %arg3[%c0, %c0_0] : memref<16x1xf32, #tpu.memory_space<vmem>>, vector<16x1xf32>
    %c0_i32 = arith.constant 0 : i32
    %1 = arith.cmpi eq, %arg0, %c0_i32 : i32
    %c0_i32_1 = arith.constant 0 : i32
    %2 = arith.cmpi eq, %arg1, %c0_i32_1 : i32
    %3 = arith.andi %1, %2 : i1
    %4 = arith.extui %3 : i1 to i32
    %c0_i32_2 = arith.constant 0 : i32
    %5 = arith.cmpi ne, %4, %c0_i32_2 : i32
    scf.if %5 {
      %c0_9 = arith.constant 0 : index
      %c0_10 = arith.constant 0 : index
      %17 = vector.load %arg8[%c0_9, %c0_10] : memref<1x128xf32, #tpu.memory_space<vmem>>, vector<1x128xf32>
      %18 = vector.shape_cast %17 : vector<1x128xf32> to vector<1x128xf32>
      %19 = vector.broadcast %18 : vector<1x128xf32> to vector<16x128xf32>
      %c0_11 = arith.constant 0 : index
      %c0_12 = arith.constant 0 : index
      %20 = vector.load %arg14[%c0_11, %c0_12] : memref<16x128xf32, #tpu.memory_space<vmem>>, vector<16x128xf32>
      tpu.vector_store %arg14[%c0_11, %c0_12], %19 {strides = array<i32>} : memref<16x128xf32, #tpu.memory_space<vmem>>, vector<16x128xf32>,
    } else {
    }
    %c1_i32 = arith.constant 1 : i32
    %6 = arith.cmpi eq, %arg0, %c1_i32 : i32
    %c0_i32_3 = arith.constant 0 : i32
    %7 = arith.cmpi eq, %arg1, %c0_i32_3 : i32
    %8 = arith.andi %6, %7 : i1
    %9 = arith.extui %8 : i1 to i32
    %c0_i32_4 = arith.constant 0 : i32
    %10 = arith.cmpi ne, %9, %c0_i32_4 : i32
    scf.if %10 {
      %c0_9 = arith.constant 0 : index
      %c0_10 = arith.constant 0 : index
      %17 = vector.load %arg13[%c0_9, %c0_10] : memref<1x128xf32, #tpu.memory_space<vmem>>, vector<1x128xf32>
      %18 = vector.shape_cast %17 : vector<1x128xf32> to vector<1x128xf32>
      %19 = vector.broadcast %18 : vector<1x128xf32> to vector<16x128xf32>
      %c0_11 = arith.constant 0 : index
      %c0_12 = arith.constant 0 : index
      %20 = vector.load %arg15[%c0_11, %c0_12] : memref<16x128xf32, #tpu.memory_space<vmem>>, vector<16x128xf32>
      tpu.vector_store %arg15[%c0_11, %c0_12], %19 {strides = array<i32>} : memref<16x128xf32, #tpu.memory_space<vmem>>, vector<16x128xf32>,
    } else {
    }
    %c0_i32_5 = arith.constant 0 : i32
    %11 = arith.cmpi eq, %arg0, %c0_i32_5 : i32
    %12 = arith.extui %11 : i1 to i32
    %c0_i32_6 = arith.constant 0 : i32
    %13 = arith.cmpi ne, %12, %c0_i32_6 : i32
    scf.if %13 {
      %c0_9 = arith.constant 0 : index
      %c0_10 = arith.constant 0 : index
      %17 = vector.load %arg2[%c0_9, %c0_10] : memref<16x128xbf16, #tpu.memory_space<vmem>>, vector<16x128xbf16>
      %c0_11 = arith.constant 0 : index
      %c0_12 = arith.constant 0 : index
      %18 = vector.load %arg4[%c0_11, %c0_12] : memref<128x256xbf16, #tpu.memory_space<vmem>>, vector<128x256xbf16>
      %cst = arith.constant dense<0.000000e+00> : vector<16x256xf32>
      %19 = tpu.matmul %17, %18, %cst {dimension_numbers = #tpu.dot_dimension_numbers<[1], [0], [0], [1], [0, 0, 1, 1], [], []>} : vector<16x128xbf16>, vector<128x256xbf16>, vector<16x256xf32> -> vector<16x256xf32>
      %c0_13 = arith.constant 0 : index
      %c0_14 = arith.constant 0 : index
      %20 = vector.load %arg5[%c0_13, %c0_14] : memref<1x256xf32, #tpu.memory_space<vmem>>, vector<1x256xf32>
      %c0_15 = arith.constant 0 : index
      %c0_16 = arith.constant 0 : index
      %21 = vector.load %arg6[%c0_15, %c0_16] : memref<1x256xf32, #tpu.memory_space<vmem>>, vector<1x256xf32>
      %22 = vector.broadcast %0 : vector<16x1xf32> to vector<16x256xf32>
      %23 = arith.mulf %19, %22 : vector<16x256xf32>
      %cst_17 = arith.constant dense<0.000000e+00> : vector<256xf32>
      %24 = vector.multi_reduction <add>, %23, %cst_17 [0] : vector<16x256xf32> to vector<256xf32>
      %25 = vector.shape_cast %24 : vector<256xf32> to vector<1x256xf32>
      %26 = arith.mulf %19, %19 : vector<16x256xf32>
      %27 = vector.broadcast %0 : vector<16x1xf32> to vector<16x256xf32>
      %28 = arith.mulf %26, %27 : vector<16x256xf32>
      %cst_18 = arith.constant dense<0.000000e+00> : vector<256xf32>
      %29 = vector.multi_reduction <add>, %28, %cst_18 [0] : vector<16x256xf32> to vector<256xf32>
      %30 = vector.shape_cast %29 : vector<256xf32> to vector<1x256xf32>
      %31 = arith.mulf %25, %25 : vector<1x256xf32>
      %32 = arith.subf %30, %31 : vector<1x256xf32>
      %cst_19 = arith.constant 0.000000e+00 : f32
      %33 = vector.broadcast %cst_19 : f32 to vector<1x256xf32>
      %34 = arith.maximumf %32, %33 : vector<1x256xf32>
      %cst_20 = arith.constant 9.99999974E-6 : f32
      %35 = vector.broadcast %cst_20 : f32 to vector<1x256xf32>
      %36 = arith.addf %34, %35 : vector<1x256xf32>
      %37 = math.rsqrt %36 : vector<1x256xf32>
      %38 = arith.mulf %20, %37 : vector<1x256xf32>
      %39 = arith.mulf %25, %38 : vector<1x256xf32>
      %40 = arith.subf %21, %39 : vector<1x256xf32>
      %41 = vector.broadcast %38 : vector<1x256xf32> to vector<16x256xf32>
      %42 = arith.mulf %19, %41 : vector<16x256xf32>
      %43 = vector.broadcast %40 : vector<1x256xf32> to vector<16x256xf32>
      %44 = arith.addf %42, %43 : vector<16x256xf32>
      %cst_21 = arith.constant 0.000000e+00 : f32
      %45 = vector.broadcast %cst_21 : f32 to vector<16x256xf32>
      %46 = arith.maximumf %44, %45 : vector<16x256xf32>
      %c0_22 = arith.constant 0 : index
      %c0_23 = arith.constant 0 : index
      %47 = vector.load %arg14[%c0_22, %c0_23] : memref<16x128xf32, #tpu.memory_space<vmem>>, vector<16x128xf32>
      %48 = arith.truncf %46 : vector<16x256xf32> to vector<16x256xbf16>
      %c0_24 = arith.constant 0 : index
      %c0_25 = arith.constant 0 : index
      %49 = vector.load %arg7[%c0_24, %c0_25] : memref<256x128xbf16, #tpu.memory_space<vmem>>, vector<256x128xbf16>
      %cst_26 = arith.constant dense<0.000000e+00> : vector<16x128xf32>
      %50 = tpu.matmul %48, %49, %cst_26 {dimension_numbers = #tpu.dot_dimension_numbers<[1], [0], [0], [1], [0, 0, 1, 1], [], []>} : vector<16x256xbf16>, vector<256x128xbf16>, vector<16x128xf32> -> vector<16x128xf32>
      %51 = arith.addf %47, %50 : vector<16x128xf32>
      %c0_27 = arith.constant 0 : index
      %c0_28 = arith.constant 0 : index
      %52 = vector.load %arg14[%c0_27, %c0_28] : memref<16x128xf32, #tpu.memory_space<vmem>>, vector<16x128xf32>
      tpu.vector_store %arg14[%c0_27, %c0_28], %51 {strides = array<i32>} : memref<16x128xf32, #tpu.memory_space<vmem>>, vector<16x128xf32>,
    } else {
    }
    %c1_i32_7 = arith.constant 1 : i32
    %14 = arith.cmpi eq, %arg0, %c1_i32_7 : i32
    %15 = arith.extui %14 : i1 to i32
    %c0_i32_8 = arith.constant 0 : i32
    %16 = arith.cmpi ne, %15, %c0_i32_8 : i32
    scf.if %16 {
      %c0_9 = arith.constant 0 : index
      %c0_10 = arith.constant 0 : index
      %17 = vector.load %arg14[%c0_9, %c0_10] : memref<16x128xf32, #tpu.memory_space<vmem>>, vector<16x128xf32>
      %18 = arith.truncf %17 : vector<16x128xf32> to vector<16x128xbf16>
      %c0_11 = arith.constant 0 : index
      %c0_12 = arith.constant 0 : index
      %19 = vector.load %arg9[%c0_11, %c0_12] : memref<128x256xbf16, #tpu.memory_space<vmem>>, vector<128x256xbf16>
      %cst = arith.constant dense<0.000000e+00> : vector<16x256xf32>
      %20 = tpu.matmul %18, %19, %cst {dimension_numbers = #tpu.dot_dimension_numbers<[1], [0], [0], [1], [0, 0, 1, 1], [], []>} : vector<16x128xbf16>, vector<128x256xbf16>, vector<16x256xf32> -> vector<16x256xf32>
      %c0_13 = arith.constant 0 : index
      %c0_14 = arith.constant 0 : index
      %21 = vector.load %arg10[%c0_13, %c0_14] : memref<1x256xf32, #tpu.memory_space<vmem>>, vector<1x256xf32>
      %c0_15 = arith.constant 0 : index
      %c0_16 = arith.constant 0 : index
      %22 = vector.load %arg11[%c0_15, %c0_16] : memref<1x256xf32, #tpu.memory_space<vmem>>, vector<1x256xf32>
      %23 = vector.broadcast %0 : vector<16x1xf32> to vector<16x256xf32>
      %24 = arith.mulf %20, %23 : vector<16x256xf32>
      %cst_17 = arith.constant dense<0.000000e+00> : vector<256xf32>
      %25 = vector.multi_reduction <add>, %24, %cst_17 [0] : vector<16x256xf32> to vector<256xf32>
      %26 = vector.shape_cast %25 : vector<256xf32> to vector<1x256xf32>
      %27 = arith.mulf %20, %20 : vector<16x256xf32>
      %28 = vector.broadcast %0 : vector<16x1xf32> to vector<16x256xf32>
      %29 = arith.mulf %27, %28 : vector<16x256xf32>
      %cst_18 = arith.constant dense<0.000000e+00> : vector<256xf32>
      %30 = vector.multi_reduction <add>, %29, %cst_18 [0] : vector<16x256xf32> to vector<256xf32>
      %31 = vector.shape_cast %30 : vector<256xf32> to vector<1x256xf32>
      %32 = arith.mulf %26, %26 : vector<1x256xf32>
      %33 = arith.subf %31, %32 : vector<1x256xf32>
      %cst_19 = arith.constant 0.000000e+00 : f32
      %34 = vector.broadcast %cst_19 : f32 to vector<1x256xf32>
      %35 = arith.maximumf %33, %34 : vector<1x256xf32>
      %cst_20 = arith.constant 9.99999974E-6 : f32
      %36 = vector.broadcast %cst_20 : f32 to vector<1x256xf32>
      %37 = arith.addf %35, %36 : vector<1x256xf32>
      %38 = math.rsqrt %37 : vector<1x256xf32>
      %39 = arith.mulf %21, %38 : vector<1x256xf32>
      %40 = arith.mulf %26, %39 : vector<1x256xf32>
      %41 = arith.subf %22, %40 : vector<1x256xf32>
      %42 = vector.broadcast %39 : vector<1x256xf32> to vector<16x256xf32>
      %43 = arith.mulf %20, %42 : vector<16x256xf32>
      %44 = vector.broadcast %41 : vector<1x256xf32> to vector<16x256xf32>
      %45 = arith.addf %43, %44 : vector<16x256xf32>
      %cst_21 = arith.constant 0.000000e+00 : f32
      %46 = vector.broadcast %cst_21 : f32 to vector<16x256xf32>
      %47 = arith.maximumf %45, %46 : vector<16x256xf32>
      %c0_22 = arith.constant 0 : index
      %c0_23 = arith.constant 0 : index
      %48 = vector.load %arg15[%c0_22, %c0_23] : memref<16x128xf32, #tpu.memory_space<vmem>>, vector<16x128xf32>
      %49 = arith.truncf %47 : vector<16x256xf32> to vector<16x256xbf16>
      %c0_24 = arith.constant 0 : index
      %c0_25 = arith.constant 0 : index
      %50 = vector.load %arg12[%c0_24, %c0_25] : memref<256x128xbf16, #tpu.memory_space<vmem>>, vector<256x128xbf16>
      %cst_26 = arith.constant dense<0.000000e+00> : vector<16x128xf32>
      %51 = tpu.matmul %49, %50, %cst_26 {dimension_numbers = #tpu.dot_dimension_numbers<[1], [0], [0], [1], [0, 0, 1, 1], [], []>} : vector<16x256xbf16>, vector<256x128xbf16>, vector<16x128xf32> -> vector<16x128xf32>
      %52 = arith.addf %48, %51 : vector<16x128xf32>
      %c0_27 = arith.constant 0 : index
      %c0_28 = arith.constant 0 : index
      %53 = vector.load %arg15[%c0_27, %c0_28] : memref<16x128xf32, #tpu.memory_space<vmem>>, vector<16x128xf32>
      tpu.vector_store %arg15[%c0_27, %c0_28], %52 {strides = array<i32>} : memref<16x128xf32, #tpu.memory_space<vmem>>, vector<16x128xf32>,
    } else {
    }
    return
  }
  func.func @transform_0(%arg0: i32, %arg1: i32) -> (i32, i32) {
    %c0_i32 = arith.constant 0 : i32
    %c0_i32_0 = arith.constant 0 : i32
    %c0_i32_1 = arith.constant 0 : i32
    return %c0_i32, %c0_i32_0 : i32, i32
  }
  func.func @transform_1(%arg0: i32, %arg1: i32) -> (i32, i32) {
    %c0_i32 = arith.constant 0 : i32
    %c0_i32_0 = arith.constant 0 : i32
    %c0_i32_1 = arith.constant 0 : i32
    return %c0_i32, %c0_i32_0 : i32, i32
  }
  func.func @transform_2(%arg0: i32, %arg1: i32) -> (i32, i32) {
    %c1_i32 = arith.constant 1 : i32
    %0 = arith.subi %c1_i32, %arg0 : i32
    %1 = arith.muli %arg1, %0 : i32
    %c0_i32 = arith.constant 0 : i32
    %2 = arith.muli %c0_i32, %arg0 : i32
    %3 = arith.addi %1, %2 : i32
    %c0_i32_0 = arith.constant 0 : i32
    %c0_i32_1 = arith.constant 0 : i32
    return %c0_i32_0, %3 : i32, i32
  }
  func.func @transform_3(%arg0: i32, %arg1: i32) -> (i32, i32) {
    %c1_i32 = arith.constant 1 : i32
    %0 = arith.subi %c1_i32, %arg0 : i32
    %1 = arith.muli %arg1, %0 : i32
    %c0_i32 = arith.constant 0 : i32
    %2 = arith.muli %c0_i32, %arg0 : i32
    %3 = arith.addi %1, %2 : i32
    %c0_i32_0 = arith.constant 0 : i32
    %c0_i32_1 = arith.constant 0 : i32
    return %c0_i32_0, %3 : i32, i32
  }
  func.func @transform_4(%arg0: i32, %arg1: i32) -> (i32, i32) {
    %c1_i32 = arith.constant 1 : i32
    %0 = arith.subi %c1_i32, %arg0 : i32
    %1 = arith.muli %arg1, %0 : i32
    %c0_i32 = arith.constant 0 : i32
    %2 = arith.muli %c0_i32, %arg0 : i32
    %3 = arith.addi %1, %2 : i32
    %c0_i32_0 = arith.constant 0 : i32
    %c0_i32_1 = arith.constant 0 : i32
    return %c0_i32_0, %3 : i32, i32
  }
  func.func @transform_5(%arg0: i32, %arg1: i32) -> (i32, i32) {
    %c1_i32 = arith.constant 1 : i32
    %0 = arith.subi %c1_i32, %arg0 : i32
    %1 = arith.muli %arg1, %0 : i32
    %c0_i32 = arith.constant 0 : i32
    %2 = arith.muli %c0_i32, %arg0 : i32
    %3 = arith.addi %1, %2 : i32
    %c0_i32_0 = arith.constant 0 : i32
    %c0_i32_1 = arith.constant 0 : i32
    return %3, %c0_i32_0 : i32, i32
  }
  func.func @transform_6(%arg0: i32, %arg1: i32) -> (i32, i32) {
    %c0_i32 = arith.constant 0 : i32
    %c0_i32_0 = arith.constant 0 : i32
    %c0_i32_1 = arith.constant 0 : i32
    return %c0_i32, %c0_i32_0 : i32, i32
  }
  func.func @transform_7(%arg0: i32, %arg1: i32) -> (i32, i32) {
    %0 = arith.muli %arg1, %arg0 : i32
    %c0_i32 = arith.constant 0 : i32
    %c0_i32_0 = arith.constant 0 : i32
    return %c0_i32, %0 : i32, i32
  }
  func.func @transform_8(%arg0: i32, %arg1: i32) -> (i32, i32) {
    %0 = arith.muli %arg1, %arg0 : i32
    %c0_i32 = arith.constant 0 : i32
    %c0_i32_0 = arith.constant 0 : i32
    return %c0_i32, %0 : i32, i32
  }
  func.func @transform_9(%arg0: i32, %arg1: i32) -> (i32, i32) {
    %0 = arith.muli %arg1, %arg0 : i32
    %c0_i32 = arith.constant 0 : i32
    %c0_i32_0 = arith.constant 0 : i32
    return %c0_i32, %0 : i32, i32
  }
  func.func @transform_10(%arg0: i32, %arg1: i32) -> (i32, i32) {
    %0 = arith.muli %arg1, %arg0 : i32
    %c0_i32 = arith.constant 0 : i32
    %c0_i32_0 = arith.constant 0 : i32
    return %0, %c0_i32 : i32, i32
  }
  func.func @transform_11(%arg0: i32, %arg1: i32) -> (i32, i32) {
    %c0_i32 = arith.constant 0 : i32
    %c0_i32_0 = arith.constant 0 : i32
    %c0_i32_1 = arith.constant 0 : i32
    return %c0_i32, %c0_i32_0 : i32, i32
  }
  func.func @transform_12(%arg0: i32, %arg1: i32) -> (i32, i32) {
    %c0_i32 = arith.constant 0 : i32
    %c0_i32_0 = arith.constant 0 : i32
    %c0_i32_1 = arith.constant 0 : i32
    return %c0_i32, %c0_i32_0 : i32, i32
  }
  func.func @transform_13(%arg0: i32, %arg1: i32) -> (i32, i32) {
    %c0_i32 = arith.constant 0 : i32
    %c0_i32_0 = arith.constant 0 : i32
    %c0_i32_1 = arith.constant 0 : i32
    return %c0_i32, %c0_i32_0 : i32, i32
  }
}

</mosaic_0001>

<llo_original>
// kernel: siamese_arm_forward.2
$region0: #{siamese_arm_forward.2}
  #allocation0 [shape = 'u32[]', space=smem, size = 0x4, offset = 0x4, fixed_abs, tag = 'smem constant byte address 0x4 - core index']
  #allocation1 [shape = 'u32[72,128]{1,0:T(1,128)}', space=vmem, size = 0x9000, scoped, tag = 'internal scratch']
  %s0 = inlined_call_operand.vmem [shape: bf16[16,1024], index: 0, kind: input, shape index: {}]
  %s1 = inlined_call_operand.hbm [shape: bf16[1024,128], index: 1, kind: input, shape index: {}]
  %s2 = inlined_call_operand.vmem [shape: f32[16,128], index: 2, kind: output, shape index: {0}]
  %s3 = inlined_call_operand.vmem [shape: bf16[16,128], index: 3, kind: output, shape index: {1}]
  %4 = xla_tuple %s2, %s3
  %s5 = sld [smem:[#allocation0]]
  $region38: #{siamese_arm_forward.2} parent=0
    _
  %s7 = ssub.s32 1, %s5
  %s8 = scalar_select 0, %s7, %s5
  $region1: #{siamese_arm_forward.2} parent=0
    #allocation2 [shape = 'u8[262144]{0}', space=vmem, size = 0x40000, scoped, tag = 'input window, operand 1, single buffered']
    #allocation3 [shape = 's32[1]{0}', space=sflag, size = 0x4, scoped, tag = 'scoped memory for siamese_arm_forward.2']
    %9 = vsyncpa [#allocation3], 0
    // Predicated region
    $region2: #{siamese_arm_forward.2} parent=1 // pred_check
      _
    $region3: #{siamese_arm_forward.2} parent=1 // pred_check_branch
      %11 = sbr.rel (0) target = $region5
    $region4: #{siamese_arm_forward.2} parent=1 // pred_region
      _
    $region5: #{siamese_arm_forward.2} parent=1 // pred_fallthru
      _
    // Predicated region
    $region6: #{siamese_arm_forward.2} parent=1 // pred_check
      _
    $region7: #{siamese_arm_forward.2} parent=1 // pred_check_branch
      %13 = sbr.rel (0) target = $region9
    $region8: #{siamese_arm_forward.2} parent=1 // pred_region
      %15 = vsyncadd [#allocation3], 0
      %s16 = sshll.u32 %s1, 4
      %s17 = int_to_ptr.hbm [resolvable:$true] %s16
      %s18 = sshll.u32 [#allocation2], 4
      %s19 = int_to_ptr.vmem [resolvable:$true] %s18
      %24 = dma.hbm_to_vmem [thread:$0]  %s17, 8192, %s19, [#allocation3], 64, 64, 4
    $region9: #{siamese_arm_forward.2} parent=1 // pred_fallthru
      _
    // Predicated region
    $region10: #{siamese_arm_forward.2} parent=1 // pred_check
      _
    $region11: #{siamese_arm_forward.2} parent=1 // pred_check_branch
      %26 = sbr.rel (0) target = $region13
    $region12: #{siamese_arm_forward.2} parent=1 // pred_region
      %28 = dma.done [#allocation3], 8192
    $region13: #{siamese_arm_forward.2} parent=1 // pred_fallthru
      _
    %p29 = scmp.eq.s32.totalorder 0, 0
    // Predicated region
    $region14: #{siamese_arm_forward.2} parent=1 // pred_check
      %p30 = pneg %p29
    $region15: #{siamese_arm_forward.2} parent=1 // pred_check_branch
      %32 = sbr.rel (%p30) target = $region17
    $region16: #{siamese_arm_forward.2} parent=1 // pred_region
      %33 = vst [vmem:[%s2] sm:$0xff] 0.0
      %34 = vst [vmem:[%s2 + $0x8] sm:$0xff] 0.0
    $region17: #{siamese_arm_forward.2} parent=1 // pred_fallthru
      _
    %v35 = vld [vmem:[%s2] sm:$0xff]
    %v36 = vld [vmem:[%s2 + $0x8] sm:$0xff]
    %v37 = vld [vmem:[%s0] sm:$0xff]
    %v38 = vld [vmem:[%s0 + $0x8] sm:$0xff]
    %v39 = vld [vmem:[%s0 + $0x10] sm:$0xff]
    %v40 = vld [vmem:[%s0 + $0x18] sm:$0xff]
    %v41 = vld [vmem:[%s0 + $0x20] sm:$0xff]
    %v42 = vld [vmem:[%s0 + $0x28] sm:$0xff]
    %v43 = vld [vmem:[%s0 + $0x30] sm:$0xff]
    %v44 = vld [vmem:[%s0 + $0x38] sm:$0xff]
    %v45 = vld [vmem:[#allocation2] sm:$0xf]
    %v46 = vld [vmem:[#allocation2 + $0x4] sm:$0xf]
    %v47 = vld [vmem:[#allocation2 + $0x8] sm:$0xf]
    %v48 = vld [vmem:[#allocation2 + $0xc] sm:$0xf]
    %v49 = vld [vmem:[#allocation2 + $0x10] sm:$0xf]
    %v50 = vld [vmem:[#allocation2 + $0x14] sm:$0xf]
    %v51 = vld [vmem:[#allocation2 + $0x18] sm:$0xf]
    %v52 = vld [vmem:[#allocation2 + $0x1c] sm:$0xf]
    %v53 = vld [vmem:[#allocation2 + $0x20] sm:$0xf]
    %v54 = vld [vmem:[#allocation2 + $0x24] sm:$0xf]
    %v55 = vld [vmem:[#allocation2 + $0x28] sm:$0xf]
    %v56 = vld [vmem:[#allocation2 + $0x2c] sm:$0xf]
    %v57 = vld [vmem:[#allocation2 + $0x30] sm:$0xf]
    %v58 = vld [vmem:[#allocation2 + $0x34] sm:$0xf]
    %v59 = vld [vmem:[#allocation2 + $0x38] sm:$0xf]
    %v60 = vld [vmem:[#allocation2 + $0x3c] sm:$0xf]
    %v61 = vld [vmem:[#allocation2 + $0x40] sm:$0xf]
    %v62 = vld [vmem:[#allocation2 + $0x44] sm:$0xf]
    %v63 = vld [vmem:[#allocation2 + $0x48] sm:$0xf]
    %v64 = vld [vmem:[#allocation2 + $0x4c] sm:$0xf]
    %v65 = vld [vmem:[#allocation2 + $0x50] sm:$0xf]
    %v66 = vld [vmem:[#allocation2 + $0x54] sm:$0xf]
    %v67 = vld [vmem:[#allocation2 + $0x58] sm:$0xf]
    %v68 = vld [vmem:[#allocation2 + $0x5c] sm:$0xf]
    %v69 = vld [vmem:[#allocation2 + $0x60] sm:$0xf]
    %v70 = vld [vmem:[#allocation2 + $0x64] sm:$0xf]
    %v71 = vld [vmem:[#allocation2 + $0x68] sm:$0xf]
    %v72 = vld [vmem:[#allocation2 + $0x6c] sm:$0xf]
    %v73 = vld [vmem:[#allocation2 + $0x70] sm:$0xf]
    %v74 = vld [vmem:[#allocation2 + $0x74] sm:$0xf]
    %v75 = vld [vmem:[#allocation2 + $0x78] sm:$0xf]
    %v76 = vld [vmem:[#allocation2 + $0x7c] sm:$0xf]
    %v77 = vld [vmem:[#allocation2 + $0x80] sm:$0xf]
    %v78 = vld [vmem:[#allocation2 + $0x84] sm:$0xf]
    %v79 = vld [vmem:[#allocation2 + $0x88] sm:$0xf]
    %v80 = vld [vmem:[#allocation2 + $0x8c] sm:$0xf]
    %v81 = vld [vmem:[#allocation2 + $0x90] sm:$0xf]
    %v82 = vld [vmem:[#allocation2 + $0x94] sm:$0xf]
    %v83 = vld [vmem:[#allocation2 + $0x98] sm:$0xf]
    %v84 = vld [vmem:[#allocation2 + $0x9c] sm:$0xf]
    %v85 = vld [vmem:[#allocation2 + $0xa0] sm:$0xf]
    %v86 = vld [vmem:[#allocation2 + $0xa4] sm:$0xf]
    %v87 = vld [vmem:[#allocation2 + $0xa8] sm:$0xf]
    %v88 = vld [vmem:[#allocation2 + $0xac] sm:$0xf]
    %v89 = vld [vmem:[#allocation2 + $0xb0] sm:$0xf]
    %v90 = vld [vmem:[#allocation2 + $0xb4] sm:$0xf]
    %v91 = vld [vmem:[#allocation2 + $0xb8] sm:$0xf]
    %v92 = vld [vmem:[#allocation2 + $0xbc] sm:$0xf]
    %v93 = vld [vmem:[#allocation2 + $0xc0] sm:$0xf]
    %v94 = vld [vmem:[#allocation2 + $0xc4] sm:$0xf]
    %v95 = vld [vmem:[#allocation2 + $0xc8] sm:$0xf]
    %v96 = vld [vmem:[#allocation2 + $0xcc] sm:$0xf]
    %v97 = vld [vmem:[#allocation2 + $0xd0] sm:$0xf]
    %v98 = vld [vmem:[#allocation2 + $0xd4] sm:$0xf]
    %v99 = vld [vmem:[#allocation2 + $0xd8] sm:$0xf]
    %v100 = vld [vmem:[#allocation2 + $0xdc] sm:$0xf]
    %v101 = vld [vmem:[#allocation2 + $0xe0] sm:$0xf]
    %v102 = vld [vmem:[#allocation2 + $0xe4] sm:$0xf]
    %v103 = vld [vmem:[#allocation2 + $0xe8] sm:$0xf]
    %v104 = vld [vmem:[#allocation2 + $0xec] sm:$0xf]
    %v105 = vld [vmem:[#allocation2 + $0xf0] sm:$0xf]
    %v106 = vld [vmem:[#allocation2 + $0xf4] sm:$0xf]
    %v107 = vld [vmem:[#allocation2 + $0xf8] sm:$0xf]
    %v108 = vld [vmem:[#allocation2 + $0xfc] sm:$0xf]
    %v109 = vld [vmem:[#allocation2 + $0x100] sm:$0xf]
    %v110 = vld [vmem:[#allocation2 + $0x104] sm:$0xf]
    %v111 = vld [vmem:[#allocation2 + $0x108] sm:$0xf]
    %v112 = vld [vmem:[#allocation2 + $0x10c] sm:$0xf]
    %v113 = vld [vmem:[#allocation2 + $0x110] sm:$0xf]
    %v114 = vld [vmem:[#allocation2 + $0x114] sm:$0xf]
    %v115 = vld [vmem:[#allocation2 + $0x118] sm:$0xf]
    %v116 = vld [vmem:[#allocation2 + $0x11c] sm:$0xf]
    %v117 = vld [vmem:[#allocation2 + $0x120] sm:$0xf]
    %v118 = vld [vmem:[#allocation2 + $0x124] sm:$0xf]
    %v119 = vld [vmem:[#allocation2 + $0x128] sm:$0xf]
    %v120 = vld [vmem:[#allocation2 + $0x12c] sm:$0xf]
    %v121 = vld [vmem:[#allocation2 + $0x130] sm:$0xf]
    %v122 = vld [vmem:[#allocation2 + $0x134] sm:$0xf]
    %v123 = vld [vmem:[#allocation2 + $0x138] sm:$0xf]
    %v124 = vld [vmem:[#allocation2 + $0x13c] sm:$0xf]
    %v125 = vld [vmem:[#allocation2 + $0x140] sm:$0xf]
    %v126 = vld [vmem:[#allocation2 + $0x144] sm:$0xf]
    %v127 = vld [vmem:[#allocation2 + $0x148] sm:$0xf]
    %v128 = vld [vmem:[#allocation2 + $0x14c] sm:$0xf]
    %v129 = vld [vmem:[#allocation2 + $0x150] sm:$0xf]
    %v130 = vld [vmem:[#allocation2 + $0x154] sm:$0xf]
    %v131 = vld [vmem:[#allocation2 + $0x158] sm:$0xf]
    %v132 = vld [vmem:[#allocation2 + $0x15c] sm:$0xf]
    %v133 = vld [vmem:[#allocation2 + $0x160] sm:$0xf]
    %v134 = vld [vmem:[#allocation2 + $0x164] sm:$0xf]
    %v135 = vld [vmem:[#allocation2 + $0x168] sm:$0xf]
    %v136 = vld [vmem:[#allocation2 + $0x16c] sm:$0xf]
    %v137 = vld [vmem:[#allocation2 + $0x170] sm:$0xf]
    %v138 = vld [vmem:[#allocation2 + $0x174] sm:$0xf]
    %v139 = vld [vmem:[#allocation2 + $0x178] sm:$0xf]
    %v140 = vld [vmem:[#allocation2 + $0x17c] sm:$0xf]
    %v141 = vld [vmem:[#allocation2 + $0x180] sm:$0xf]
    %v142 = vld [vmem:[#allocation2 + $0x184] sm:$0xf]
    %v143 = vld [vmem:[#allocation2 + $0x188] sm:$0xf]
    %v144 = vld [vmem:[#allocation2 + $0x18c] sm:$0xf]
    %v145 = vld [vmem:[#allocation2 + $0x190] sm:$0xf]
    %v146 = vld [vmem:[#allocation2 + $0x194] sm:$0xf]
    %v147 = vld [vmem:[#allocation2 + $0x198] sm:$0xf]
    %v148 = vld [vmem:[#allocation2 + $0x19c] sm:$0xf]
    %v149 = vld [vmem:[#allocation2 + $0x1a0] sm:$0xf]
    %v150 = vld [vmem:[#allocation2 + $0x1a4] sm:$0xf]
    %v151 = vld [vmem:[#allocation2 + $0x1a8] sm:$0xf]
    %v152 = vld [vmem:[#allocation2 + $0x1ac] sm:$0xf]
    %v153 = vld [vmem:[#allocation2 + $0x1b0] sm:$0xf]
    %v154 = vld [vmem:[#allocation2 + $0x1b4] sm:$0xf]
    %v155 = vld [vmem:[#allocation2 + $0x1b8] sm:$0xf]
    %v156 = vld [vmem:[#allocation2 + $0x1bc] sm:$0xf]
    %v157 = vld [vmem:[#allocation2 + $0x1c0] sm:$0xf]
    %v158 = vld [vmem:[#allocation2 + $0x1c4] sm:$0xf]
    %v159 = vld [vmem:[#allocation2 + $0x1c8] sm:$0xf]
    %v160 = vld [vmem:[#allocation2 + $0x1cc] sm:$0xf]
    %v161 = vld [vmem:[#allocation2 + $0x1d0] sm:$0xf]
    %v162 = vld [vmem:[#allocation2 + $0x1d4] sm:$0xf]
    %v163 = vld [vmem:[#allocation2 + $0x1d8] sm:$0xf]
    %v164 = vld [vmem:[#allocation2 + $0x1dc] sm:$0xf]
    %v165 = vld [vmem:[#allocation2 + $0x1e0] sm:$0xf]
    %v166 = vld [vmem:[#allocation2 + $0x1e4] sm:$0xf]
    %v167 = vld [vmem:[#allocation2 + $0x1e8] sm:$0xf]
    %v168 = vld [vmem:[#allocation2 + $0x1ec] sm:$0xf]
    %v169 = vld [vmem:[#allocation2 + $0x1f0] sm:$0xf]
    %v170 = vld [vmem:[#allocation2 + $0x1f4] sm:$0xf]
    %v171 = vld [vmem:[#allocation2 + $0x1f8] sm:$0xf]
    %v172 = vld [vmem:[#allocation2 + $0x1fc] sm:$0xf]
    %v181 = vunpack.c.l.b16 %v37
    %v182 = vunpack.c.h.b16 %v37
    %v183 = vunpack.c.l.b16 %v38
    %v184 = vunpack.c.h.b16 %v38
    %v185 = vunpack.c.l.b16 %v39
    %v186 = vunpack.c.h.b16 %v39
    %v187 = vunpack.c.l.b16 %v40
    %v188 = vunpack.c.h.b16 %v40
    %v189 = vunpack.c.l.b16 %v41
    %v190 = vunpack.c.h.b16 %v41
    %v191 = vunpack.c.l.b16 %v42
    %v192 = vunpack.c.h.b16 %v42
    %v193 = vunpack.c.l.b16 %v43
    %v194 = vunpack.c.h.b16 %v43
    %v195 = vunpack.c.l.b16 %v44
    %v196 = vunpack.c.h.b16 %v44
    %v197 = vpack.c.b16 %v189, %v181
    %v198 = vpack.c.b16 %v190, %v182
    %v199 = vpack.c.b16 %v191, %v183
    %v200 = vpack.c.b16 %v192, %v184
    %v201 = vpack.c.b16 %v193, %v185
    %v202 = vpack.c.b16 %v194, %v186
    %v203 = vpack.c.b16 %v195, %v187
    %v204 = vpack.c.b16 %v196, %v188
    %v341 = vunpack.c.l.b16 %v45
    %v342 = vunpack.c.l.b16 %v46
    %v343 = vunpack.c.l.b16 %v47
    %v344 = vunpack.c.l.b16 %v48
    %v345 = vunpack.c.l.b16 %v49
    %v346 = vunpack.c.l.b16 %v50
    %v347 = vunpack.c.l.b16 %v51
    %v348 = vunpack.c.l.b16 %v52
    %v349 = vunpack.c.l.b16 %v53
    %v350 = vunpack.c.l.b16 %v54
    %v351 = vunpack.c.l.b16 %v55
    %v352 = vunpack.c.l.b16 %v56
    %v353 = vunpack.c.l.b16 %v57
    %v354 = vunpack.c.l.b16 %v58
    %v355 = vunpack.c.l.b16 %v59
    %v356 = vunpack.c.l.b16 %v60
    %v357 = vunpack.c.l.b16 %v61
    %v358 = vunpack.c.l.b16 %v62
    %v359 = vunpack.c.l.b16 %v63
    %v360 = vunpack.c.l.b16 %v64
    %v361 = vunpack.c.l.b16 %v65
    %v362 = vunpack.c.l.b16 %v66
    %v363 = vunpack.c.l.b16 %v67
    %v364 = vunpack.c.l.b16 %v68
    %v365 = vunpack.c.l.b16 %v69
    %v366 = vunpack.c.l.b16 %v70
    %v367 = vunpack.c.l.b16 %v71
    %v368 = vunpack.c.l.b16 %v72
    %v369 = vunpack.c.l.b16 %v73
    %v370 = vunpack.c.l.b16 %v74
    %v371 = vunpack.c.l.b16 %v75
    %v372 = vunpack.c.l.b16 %v76
    %v373 = vunpack.c.l.b16 %v77
    %v374 = vunpack.c.l.b16 %v78
    %v375 = vunpack.c.l.b16 %v79
    %v376 = vunpack.c.l.b16 %v80
    %v377 = vunpack.c.l.b16 %v81
    %v378 = vunpack.c.l.b16 %v82
    %v379 = vunpack.c.l.b16 %v83
    %v380 = vunpack.c.l.b16 %v84
    %v381 = vunpack.c.l.b16 %v85
    %v382 = vunpack.c.l.b16 %v86
    %v383 = vunpack.c.l.b16 %v87
    %v384 = vunpack.c.l.b16 %v88
    %v385 = vunpack.c.l.b16 %v89
    %v386 = vunpack.c.l.b16 %v90
    %v387 = vunpack.c.l.b16 %v91
    %v388 = vunpack.c.l.b16 %v92
    %v389 = vunpack.c.l.b16 %v93
    %v390 = vunpack.c.l.b16 %v94
    %v391 = vunpack.c.l.b16 %v95
    %v392 = vunpack.c.l.b16 %v96
    %v393 = vunpack.c.l.b16 %v97
    %v394 = vunpack.c.l.b16 %v98
    %v395 = vunpack.c.l.b16 %v99
    %v396 = vunpack.c.l.b16 %v100
    %v397 = vunpack.c.l.b16 %v101
    %v398 = vunpack.c.l.b16 %v102
    %v399 = vunpack.c.l.b16 %v103
    %v400 = vunpack.c.l.b16 %v104
    %v401 = vunpack.c.l.b16 %v105
    %v402 = vunpack.c.l.b16 %v106
    %v403 = vunpack.c.l.b16 %v107
    %v404 = vunpack.c.l.b16 %v108
    %v405 = vunpack.c.l.b16 %v109
    %v406 = vunpack.c.l.b16 %v110
    %v407 = vunpack.c.l.b16 %v111
    %v408 = vunpack.c.l.b16 %v112
    %v409 = vunpack.c.l.b16 %v113
    %v410 = vunpack.c.l.b16 %v114
    %v411 = vunpack.c.l.b16 %v115
    %v412 = vunpack.c.l.b16 %v116
    %v413 = vunpack.c.l.b16 %v117
    %v414 = vunpack.c.l.b16 %v118
    %v415 = vunpack.c.l.b16 %v119
    %v416 = vunpack.c.l.b16 %v120
    %v417 = vunpack.c.l.b16 %v121
    %v418 = vunpack.c.l.b16 %v122
    %v419 = vunpack.c.l.b16 %v123
    %v420 = vunpack.c.l.b16 %v124
    %v421 = vunpack.c.l.b16 %v125
    %v422 = vunpack.c.l.b16 %v126
    %v423 = vunpack.c.l.b16 %v127
    %v424 = vunpack.c.l.b16 %v128
    %v425 = vunpack.c.l.b16 %v129
    %v426 = vunpack.c.l.b16 %v130
    %v427 = vunpack.c.l.b16 %v131
    %v428 = vunpack.c.l.b16 %v132
    %v429 = vunpack.c.l.b16 %v133
    %v430 = vunpack.c.l.b16 %v134
    %v431 = vunpack.c.l.b16 %v135
    %v432 = vunpack.c.l.b16 %v136
    %v433 = vunpack.c.l.b16 %v137
    %v434 = vunpack.c.l.b16 %v138
    %v435 = vunpack.c.l.b16 %v139
    %v436 = vunpack.c.l.b16 %v140
    %v437 = vunpack.c.l.b16 %v141
    %v438 = vunpack.c.l.b16 %v142
    %v439 = vunpack.c.l.b16 %v143
    %v440 = vunpack.c.l.b16 %v144
    %v441 = vunpack.c.l.b16 %v145
    %v442 = vunpack.c.l.b16 %v146
    %v443 = vunpack.c.l.b16 %v147
    %v444 = vunpack.c.l.b16 %v148
    %v445 = vunpack.c.l.b16 %v149
    %v446 = vunpack.c.l.b16 %v150
    %v447 = vunpack.c.l.b16 %v151
    %v448 = vunpack.c.l.b16 %v152
    %v449 = vunpack.c.l.b16 %v153
    %v450 = vunpack.c.l.b16 %v154
    %v451 = vunpack.c.l.b16 %v155
    %v452 = vunpack.c.l.b16 %v156
    %v453 = vunpack.c.l.b16 %v157
    %v454 = vunpack.c.l.b16 %v158
    %v455 = vunpack.c.l.b16 %v159
    %v456 = vunpack.c.l.b16 %v160
    %v457 = vunpack.c.l.b16 %v161
    %v458 = vunpack.c.l.b16 %v162
    %v459 = vunpack.c.l.b16 %v163
    %v460 = vunpack.c.l.b16 %v164
    %v461 = vunpack.c.l.b16 %v165
    %v462 = vunpack.c.l.b16 %v166
    %v463 = vunpack.c.l.b16 %v167
    %v464 = vunpack.c.l.b16 %v168
    %v465 = vunpack.c.l.b16 %v169
    %v466 = vunpack.c.l.b16 %v170
    %v467 = vunpack.c.l.b16 %v171
    %v468 = vunpack.c.l.b16 %v172
    %v469 = vpack.c.b16 %v342, %v341
    %v470 = vpack.c.b16 %v344, %v343
    %v471 = vpack.c.b16 %v346, %v345
    %v472 = vpack.c.b16 %v348, %v347
    %v473 = vpack.c.b16 %v350, %v349
    %v474 = vpack.c.b16 %v352, %v351
    %v475 = vpack.c.b16 %v354, %v353
    %v476 = vpack.c.b16 %v356, %v355
    %v477 = vpack.c.b16 %v358, %v357
    %v478 = vpack.c.b16 %v360, %v359
    %v479 = vpack.c.b16 %v362, %v361
    %v480 = vpack.c.b16 %v364, %v363
    %v481 = vpack.c.b16 %v366, %v365
    %v482 = vpack.c.b16 %v368, %v367
    %v483 = vpack.c.b16 %v370, %v369
    %v484 = vpack.c.b16 %v372, %v371
    %v485 = vpack.c.b16 %v374, %v373
    %v486 = vpack.c.b16 %v376, %v375
    %v487 = vpack.c.b16 %v378, %v377
    %v488 = vpack.c.b16 %v380, %v379
    %v489 = vpack.c.b16 %v382, %v381
    %v490 = vpack.c.b16 %v384, %v383
    %v491 = vpack.c.b16 %v386, %v385
    %v492 = vpack.c.b16 %v388, %v387
    %v493 = vpack.c.b16 %v390, %v389
    %v494 = vpack.c.b16 %v392, %v391
    %v495 = vpack.c.b16 %v394, %v393
    %v496 = vpack.c.b16 %v396, %v395
    %v497 = vpack.c.b16 %v398, %v397
    %v498 = vpack.c.b16 %v400, %v399
    %v499 = vpack.c.b16 %v402, %v401
    %v500 = vpack.c.b16 %v404, %v403
    %v501 = vpack.c.b16 %v406, %v405
    %v502 = vpack.c.b16 %v408, %v407
    %v503 = vpack.c.b16 %v410, %v409
    %v504 = vpack.c.b16 %v412, %v411
    %v505 = vpack.c.b16 %v414, %v413
    %v506 = vpack.c.b16 %v416, %v415
    %v507 = vpack.c.b16 %v418, %v417
    %v508 = vpack.c.b16 %v420, %v419
    %v509 = vpack.c.b16 %v422, %v421
    %v510 = vpack.c.b16 %v424, %v423
    %v511 = vpack.c.b16 %v426, %v425
    %v512 = vpack.c.b16 %v428, %v427
    %v513 = vpack.c.b16 %v430, %v429
    %v514 = vpack.c.b16 %v432, %v431
    %v515 = vpack.c.b16 %v434, %v433
    %v516 = vpack.c.b16 %v436, %v435
    %v517 = vpack.c.b16 %v438, %v437
    %v518 = vpack.c.b16 %v440, %v439
    %v519 = vpack.c.b16 %v442, %v441
    %v520 = vpack.c.b16 %v444, %v443
    %v521 = vpack.c.b16 %v446, %v445
    %v522 = vpack.c.b16 %v448, %v447
    %v523 = vpack.c.b16 %v450, %v449
    %v524 = vpack.c.b16 %v452, %v451
    %v525 = vpack.c.b16 %v454, %v453
    %v526 = vpack.c.b16 %v456, %v455
    %v527 = vpack.c.b16 %v458, %v457
    %v528 = vpack.c.b16 %v460, %v459
    %v529 = vpack.c.b16 %v462, %v461
    %v530 = vpack.c.b16 %v464, %v463
    %v531 = vpack.c.b16 %v466, %v465
    %v532 = vpack.c.b16 %v468, %v467
    %597 = vmatpush.bf16.msra.mxu0 %v476
    %598 = vmatpush.bf16.msra.mxu0 %v475
    %599 = vmatpush.bf16.msra.mxu0 %v474
    %600 = vmatpush.bf16.msra.mxu0 %v473
    %601 = vmatpush.bf16.msra.mxu0 %v472
    %602 = vmatpush.bf16.msra.mxu0 %v471
    %603 = vmatpush.bf16.msra.mxu0 %v470
    %604 = vmatpush.bf16.msra.mxu0 %v469
    %605 = vmatmul.bf16.gmra.mxu0 %v197
    %v606 = vpop.f32.mrf.mxu0
    %v607 = vadd.f32 0.0, %v606
    %v608 = vpop.f32.mrf.mxu0
    %v609 = vadd.f32 0.0, %v608
    %610 = vdwg.mxu0
    %611 = vmatpush.bf16.msra.mxu0 %v484
    %612 = vmatpush.bf16.msra.mxu0 %v483
    %613 = vmatpush.bf16.msra.mxu0 %v482
    %614 = vmatpush.bf16.msra.mxu0 %v481
    %615 = vmatpush.bf16.msra.mxu0 %v480
    %616 = vmatpush.bf16.msra.mxu0 %v479
    %617 = vmatpush.bf16.msra.mxu0 %v478
    %618 = vmatpush.bf16.msra.mxu0 %v477
    %619 = vmatmul.bf16.gmra.mxu0 %v198
    %v620 = vpop.f32.mrf.mxu0
    %v621 = vadd.f32 %v607, %v620
    %v622 = vpop.f32.mrf.mxu0
    %v623 = vadd.f32 %v609, %v622
    %624 = vdwg.mxu0
    %625 = vmatpush.bf16.msra.mxu0 %v492
    %626 = vmatpush.bf16.msra.mxu0 %v491
    %627 = vmatpush.bf16.msra.mxu0 %v490
    %628 = vmatpush.bf16.msra.mxu0 %v489
    %629 = vmatpush.bf16.msra.mxu0 %v488
    %630 = vmatpush.bf16.msra.mxu0 %v487
    %631 = vmatpush.bf16.msra.mxu0 %v486
    %632 = vmatpush.bf16.msra.mxu0 %v485
    %633 = vmatmul.bf16.gmra.mxu0 %v199
    %v634 = vpop.f32.mrf.mxu0
    %v635 = vadd.f32 %v621, %v634
    %v636 = vpop.f32.mrf.mxu0
    %v637 = vadd.f32 %v623, %v636
    %638 = vdwg.mxu0
    %639 = vmatpush.bf16.msra.mxu0 %v500
    %640 = vmatpush.bf16.msra.mxu0 %v499
    %641 = vmatpush.bf16.msra.mxu0 %v498
    %642 = vmatpush.bf16.msra.mxu0 %v497
    %643 = vmatpush.bf16.msra.mxu0 %v496
    %644 = vmatpush.bf16.msra.mxu0 %v495
    %645 = vmatpush.bf16.msra.mxu0 %v494
    %646 = vmatpush.bf16.msra.mxu0 %v493
    %647 = vmatmul.bf16.gmra.mxu0 %v200
    %v648 = vpop.f32.mrf.mxu0
    %v649 = vadd.f32 %v635, %v648
    %v650 = vpop.f32.mrf.mxu0
    %v651 = vadd.f32 %v637, %v650
    %652 = vdwg.mxu0
    %653 = vmatpush.bf16.msra.mxu0 %v508
    %654 = vmatpush.bf16.msra.mxu0 %v507
    %655 = vmatpush.bf16.msra.mxu0 %v506
    %656 = vmatpush.bf16.msra.mxu0 %v505
    %657 = vmatpush.bf16.msra.mxu0 %v504
    %658 = vmatpush.bf16.msra.mxu0 %v503
    %659 = vmatpush.bf16.msra.mxu0 %v502
    %660 = vmatpush.bf16.msra.mxu0 %v501
    %661 = vmatmul.bf16.gmra.mxu0 %v201
    %v662 = vpop.f32.mrf.mxu0
    %v663 = vadd.f32 %v649, %v662
    %v664 = vpop.f32.mrf.mxu0
    %v665 = vadd.f32 %v651, %v664
    %666 = vdwg.mxu0
    %667 = vmatpush.bf16.msra.mxu0 %v516
    %668 = vmatpush.bf16.msra.mxu0 %v515
    %669 = vmatpush.bf16.msra.mxu0 %v514
    %670 = vmatpush.bf16.msra.mxu0 %v513
    %671 = vmatpush.bf16.msra.mxu0 %v512
    %672 = vmatpush.bf16.msra.mxu0 %v511
    %673 = vmatpush.bf16.msra.mxu0 %v510
    %674 = vmatpush.bf16.msra.mxu0 %v509
    %675 = vmatmul.bf16.gmra.mxu0 %v202
    %v676 = vpop.f32.mrf.mxu0
    %v677 = vadd.f32 %v663, %v676
    %v678 = vpop.f32.mrf.mxu0
    %v679 = vadd.f32 %v665, %v678
    %680 = vdwg.mxu0
    %681 = vmatpush.bf16.msra.mxu0 %v524
    %682 = vmatpush.bf16.msra.mxu0 %v523
    %683 = vmatpush.bf16.msra.mxu0 %v522
    %684 = vmatpush.bf16.msra.mxu0 %v521
    %685 = vmatpush.bf16.msra.mxu0 %v520
    %686 = vmatpush.bf16.msra.mxu0 %v519
    %687 = vmatpush.bf16.msra.mxu0 %v518
    %688 = vmatpush.bf16.msra.mxu0 %v517
    %689 = vmatmul.bf16.gmra.mxu0 %v203
    %v690 = vpop.f32.mrf.mxu0
    %v691 = vadd.f32 %v677, %v690
    %v692 = vpop.f32.mrf.mxu0
    %v693 = vadd.f32 %v679, %v692
    %694 = vdwg.mxu0
    %695 = vmatpush.bf16.msra.mxu0 %v532
    %696 = vmatpush.bf16.msra.mxu0 %v531
    %697 = vmatpush.bf16.msra.mxu0 %v530
    %698 = vmatpush.bf16.msra.mxu0 %v529
    %699 = vmatpush.bf16.msra.mxu0 %v528
    %700 = vmatpush.bf16.msra.mxu0 %v527
    %701 = vmatpush.bf16.msra.mxu0 %v526
    %702 = vmatpush.bf16.msra.mxu0 %v525
    %703 = vmatmul.bf16.gmra.mxu0 %v204
    %v704 = vpop.f32.mrf.mxu0
    %v705 = vadd.f32 %v691, %v704
    %v706 = vpop.f32.mrf.mxu0
    %v707 = vadd.f32 %v693, %v706
    %708 = vdwg.mxu0
    %v709 = vadd.f32 %v35, %v705
    %v710 = vadd.f32 %v36, %v707
    %711 = vst [vmem:[%s2] sm:$0xff] %v709
    %712 = vst [vmem:[%s2 + $0x8] sm:$0xff] %v710
    // Predicated region
    $region18: #{siamese_arm_forward.2} parent=1 // pred_check
      %p713 = pneg %p29
    $region19: #{siamese_arm_forward.2} parent=1 // pred_check_branch
      %715 = sbr.rel (%p713) target = $region21
    $region20: #{siamese_arm_forward.2} parent=1 // pred_region
      %v716 = vld [vmem:[%s2] sm:$0xff]
      %v717 = vld [vmem:[%s2 + $0x8] sm:$0xff]
      %v718 = vpack.c.bf16 %v716, %v716
      %v719 = vpack.c.bf16 %v717, %v717
      %720 = vst [vmem:[%s3] sm:$0xf] %v718
      %721 = vst [vmem:[%s3 + $0x4] sm:$0xf] %v719
    $region21: #{siamese_arm_forward.2} parent=1 // pred_fallthru
      _
    // Predicated region
    $region22: #{siamese_arm_forward.2} parent=1 // pred_check
      _
    $region23: #{siamese_arm_forward.2} parent=1 // pred_check_branch
      %723 = sbr.rel (0) target = $region25
    $region24: #{siamese_arm_forward.2} parent=1 // pred_region
      _
    $region25: #{siamese_arm_forward.2} parent=1 // pred_fallthru
      _
    // Predicated region
    $region26: #{siamese_arm_forward.2} parent=1 // pred_check
      _
    $region27: #{siamese_arm_forward.2} parent=1 // pred_check_branch
      %725 = sbr.rel (0) target = $region29
    $region28: #{siamese_arm_forward.2} parent=1 // pred_region
      _
    $region29: #{siamese_arm_forward.2} parent=1 // pred_fallthru
      _
    // Predicated region
    $region30: #{siamese_arm_forward.2} parent=1 // pred_check
      _
    $region31: #{siamese_arm_forward.2} parent=1 // pred_check_branch
      %727 = sbr.rel (0) target = $region33
    $region32: #{siamese_arm_forward.2} parent=1 // pred_region
      _
    $region33: #{siamese_arm_forward.2} parent=1 // pred_fallthru
      _
    // Predicated region
    $region34: #{siamese_arm_forward.2} parent=1 // pred_check
      _
    $region35: #{siamese_arm_forward.2} parent=1 // pred_check_branch
      %729 = sbr.rel (0) target = $region37
    $region36: #{siamese_arm_forward.2} parent=1 // pred_region
      _
    $region37: #{siamese_arm_forward.2} parent=1 // pred_fallthru
      _
    %730 = vsyncpa [#allocation3], 1

// kernel: siamese_arm_forward.3
$region0: #{siamese_arm_forward.3}
  #allocation0 [shape = 'u32[]', space=smem, size = 0x4, offset = 0x4, fixed_abs, tag = 'smem constant byte address 0x4 - core index']
  #allocation1 [shape = 'u32[72,128]{1,0:T(1,128)}', space=vmem, size = 0x9000, scoped, tag = 'internal scratch']
  %s0 = inlined_call_operand.vmem [shape: bf16[16,128], index: 0, kind: input, shape index: {}]
  %s1 = inlined_call_operand.vmem [shape: f32[16,1], index: 1, kind: input, shape index: {}]
  %s2 = inlined_call_operand.vmem [shape: bf16[128,256], index: 2, kind: input, shape index: {}]
  %s3 = inlined_call_operand.vmem [shape: f32[1,256], index: 3, kind: input, shape index: {}, may-alias: {3,8}]
  %s4 = inlined_call_operand.vmem [shape: f32[1,256], index: 4, kind: input, shape index: {}, may-alias: {4,9}]
  %s5 = inlined_call_operand.vmem [shape: bf16[256,128], index: 5, kind: input, shape index: {}]
  %s6 = inlined_call_operand.vmem [shape: f32[1,128], index: 6, kind: input, shape index: {}]
  %s7 = inlined_call_operand.hbm [shape: bf16[128,256], index: 7, kind: input, shape index: {}]
  %s8 = inlined_call_operand.vmem [shape: f32[1,256], index: 8, kind: input, shape index: {}, may-alias: {3,8}]
  %s9 = inlined_call_operand.vmem [shape: f32[1,256], index: 9, kind: input, shape index: {}, may-alias: {4,9}]
  %s10 = inlined_call_operand.hbm [shape: bf16[256,128], index: 10, kind: input, shape index: {}]
  %s11 = inlined_call_operand.vmem [shape: f32[1,128], index: 11, kind: input, shape index: {}]
  %s12 = inlined_call_operand.vmem [shape: f32[16,128], index: 12, kind: output, shape index: {0}]
  %s13 = inlined_call_operand.vmem [shape: f32[16,128], index: 13, kind: output, shape index: {1}]
  %14 = xla_tuple %s12, %s13
  %s15 = sld [smem:[#allocation0]]
  $region113: #{siamese_arm_forward.3} parent=0
    _
  %s17 = ssub.s32 1, %s15
  %s18 = scalar_select 0, %s17, %s15
  $region1: #{siamese_arm_forward.3} parent=0
    #allocation2 [shape = 'u8[131072]{0}', space=vmem, size = 0x20000, scoped, tag = 'input window, operand 7']
    #allocation3 [shape = 's32[2]{0}', space=sflag, size = 0x8, scoped, tag = 'scoped memory for siamese_arm_forward.3']
    #allocation4 [shape = 'u8[131072]{0}', space=vmem, size = 0x20000, scoped, tag = 'input window, operand 10']
    #allocation5 [shape = 's32[2]{0}', space=sflag, size = 0x8, scoped, tag = 'scoped memory for siamese_arm_forward.3']
    %19 = vsyncpa [#allocation3], 0
    %s20 = scalar_lea.sflag [#allocation3], 1
    %21 = vsyncpa %s20, 0
    %22 = vsyncpa [#allocation5], 0
    %s23 = scalar_lea.sflag [#allocation5], 1
    %24 = vsyncpa %s23, 0
    loop: start=0, step=1, limit=4
    $region2: #{siamese_arm_forward.3} parent=1 // loop_pre_header
      _
    $region3: #{siamese_arm_forward.3} parent=1 // loop_header
      %s26 = sphi 0, %s30
      %p27 = scmp.ge.s32.totalorder %s26, 4
      %s33 = sphi 0, %s45
      %s34 = sphi 0, %s41
      %s35 = sphi 0, %s33
      %s36 = sphi 0, %s34
      %s37 = sphi 0, %s35
      %s38 = sphi 0, %s36
      %s46 = sphi 0, %s46
      %s48 = sphi 0, %s46
      %s49 = sphi 0, %s48
      %s63 = sphi 0, %s49
      %s67 = sphi 0, %s67
      %s69 = sphi 0, %s67
      %s70 = sphi 0, %s69
      %s84 = sphi 0, %s70
      %s94 = sphi 0, %s96
      %s97 = sphi 0, %s94
      %s98 = sphi 0, %s97
      %s114 = sphi 0, %s98
      %s124 = sphi 0, %s126
      %s127 = sphi 0, %s124
      %s128 = sphi 0, %s127
      %s144 = sphi 0, %s128
      %s154 = sphi 0, %s156
      %s157 = sphi 0, %s154
      %s158 = sphi 0, %s157
      %s174 = sphi 0, %s158
      %s184 = sphi 0, %s186
      %s187 = sphi 0, %s184
      %s188 = sphi 0, %s187
      %s204 = sphi 0, %s188
      %s208 = sphi 0, %s208
      %s210 = sphi 0, %s208
      %s211 = sphi 0, %s210
      %s225 = sphi 0, %s211
      %s233 = sphi 0, %s235
      %s236 = sphi 0, %s233
      %s237 = sphi 0, %s236
      %s253 = sphi 0, %s237
      %s261 = sphi 0, %s263
      %s264 = sphi 0, %s261
      %s265 = sphi 0, %s264
      %s281 = sphi 0, %s265
      %s289 = sphi 0, %s291
      %s292 = sphi 0, %s289
      %s293 = sphi 0, %s292
      %s309 = sphi 0, %s293
      %s317 = sphi 0, %s319
      %s320 = sphi 0, %s317
      %s321 = sphi 0, %s320
      %s337 = sphi 0, %s321
      %s341 = sphi 0, %s341
      %s343 = sphi 0, %s341
      %s344 = sphi 0, %s343
      %s358 = sphi 0, %s344
      %s362 = sphi 0, %s362
      %s364 = sphi 0, %s362
      %s365 = sphi 0, %s364
      %s379 = sphi 0, %s365
      %s383 = sphi 0, %s383
      %s385 = sphi 0, %s383
      %s386 = sphi 0, %s385
      %s400 = sphi 0, %s386
    $region4: #{siamese_arm_forward.3} parent=1 // loop_header_branch
      %29 = sbr.rel (%p27) target = $region8
    $region5: #{siamese_arm_forward.3} parent=1 // loop_body
      %s31 = ssub.s32 %s26, 1
      %s32 = ssub.s32 %s26, 2
      %s39 = sadd.s32 1, %s34
      %p40 = scmp.ge.s32.totalorder %s39, 1
      %s41 = scalar_select %p40, 0, %s39
      %s42 = sadd.s32 1, %s33
      %s43 = scalar_select %p40, %s42, %s33
      %p44 = scmp.ge.s32.totalorder %s43, 2
      %s45 = scalar_select %p44, 0, %s43
      %s47 = sadd.s32 %s46, 1
      %p50 = scmp.eq.s32.totalorder %s26, 1
      %p51 = scmp.ne.s32.totalorder %s46, %s48
      %p52 = scmp.eq.s32.totalorder %s26, 0
      %p53 = por %p51, %p52
      %p54 = scmp.ne.s32.totalorder %s46, %s48
      %p55 = scmp.eq.s32.totalorder %s31, 1
      %p56 = por %p54, %p55
      %p57 = scmp.ne.s32.totalorder %s48, %s49
      %p58 = scmp.eq.s32.totalorder %s31, 0
      %p59 = por %p57, %p58
      %p60 = scmp.ne.s32.totalorder %s48, %s49
      %p61 = scmp.eq.s32.totalorder %s32, 1
      %p62 = por %p60, %p61
      %p64 = scmp.ne.s32.totalorder %s49, %s63
      %p65 = scmp.eq.s32.totalorder %s32, 0
      %p66 = por %p64, %p65
      %s68 = sadd.s32 %s67, 1
      %p71 = scmp.eq.s32.totalorder %s26, 1
      %p72 = scmp.ne.s32.totalorder %s67, %s69
      %p73 = scmp.eq.s32.totalorder %s26, 0
      %p74 = por %p72, %p73
      %p75 = scmp.ne.s32.totalorder %s67, %s69
      %p76 = scmp.eq.s32.totalorder %s31, 1
      %p77 = por %p75, %p76
      %p78 = scmp.ne.s32.totalorder %s69, %s70
      %p79 = scmp.eq.s32.totalorder %s31, 0
      %p80 = por %p78, %p79
      %p81 = scmp.ne.s32.totalorder %s69, %s70
      %p82 = scmp.eq.s32.totalorder %s32, 1
      %p83 = por %p81, %p82
      %p85 = scmp.ne.s32.totalorder %s70, %s84
      %p86 = scmp.eq.s32.totalorder %s32, 0
      %p87 = por %p85, %p86
      %s88 = ssub.s32 1, %s33
      %s89 = smul.u32 %s34, %s88
      %s90 = ssub.s32 1, %s45
      %s91 = smul.u32 %s41, %s90
      %s92 = ssub.s32 %s89, %s91
      %p93 = scmp.eq.s32.totalorder %s92, 0
      %s95 = sadd.s32 %s94, 1
      %s96 = scalar_select %p93, %s94, %s95
      %p99 = pneg %p93
      %p100 = scmp.eq.s32.totalorder %s26, 1
      %p101 = por %p99, %p100
      %p102 = scmp.ne.s32.totalorder %s94, %s97
      %p103 = scmp.eq.s32.totalorder %s26, 0
      %p104 = por %p102, %p103
      %p105 = scmp.ne.s32.totalorder %s94, %s97
      %p106 = scmp.eq.s32.totalorder %s31, 1
      %p107 = por %p105, %p106
      %p108 = scmp.ne.s32.totalorder %s97, %s98
      %p109 = scmp.eq.s32.totalorder %s31, 0
      %p110 = por %p108, %p109
      %p111 = scmp.ne.s32.totalorder %s97, %s98
      %p112 = scmp.eq.s32.totalorder %s32, 1
      %p113 = por %p111, %p112
      %p115 = scmp.ne.s32.totalorder %s98, %s114
      %p116 = scmp.eq.s32.totalorder %s32, 0
      %p117 = por %p115, %p116
      %s118 = ssub.s32 1, %s33
      %s119 = smul.u32 %s34, %s118
      %s120 = ssub.s32 1, %s45
      %s121 = smul.u32 %s41, %s120
      %s122 = ssub.s32 %s119, %s121
      %p123 = scmp.eq.s32.totalorder %s122, 0
      %s125 = sadd.s32 %s124, 1
      %s126 = scalar_select %p123, %s124, %s125
      %p129 = pneg %p123
      %p130 = scmp.eq.s32.totalorder %s26, 1
      %p131 = por %p129, %p130
      %p132 = scmp.ne.s32.totalorder %s124, %s127
      %p133 = scmp.eq.s32.totalorder %s26, 0
      %p134 = por %p132, %p133
      %p135 = scmp.ne.s32.totalorder %s124, %s127
      %p136 = scmp.eq.s32.totalorder %s31, 1
      %p137 = por %p135, %p136
      %p138 = scmp.ne.s32.totalorder %s127, %s128
      %p139 = scmp.eq.s32.totalorder %s31, 0
      %p140 = por %p138, %p139
      %p141 = scmp.ne.s32.totalorder %s127, %s128
      %p142 = scmp.eq.s32.totalorder %s32, 1
      %p143 = por %p141, %p142
      %p145 = scmp.ne.s32.totalorder %s128, %s144
      %p146 = scmp.eq.s32.totalorder %s32, 0
      %p147 = por %p145, %p146
      %s148 = ssub.s32 1, %s33
      %s149 = smul.u32 %s34, %s148
      %s150 = ssub.s32 1, %s45
      %s151 = smul.u32 %s41, %s150
      %s152 = ssub.s32 %s149, %s151
      %p153 = scmp.eq.s32.totalorder %s152, 0
      %s155 = sadd.s32 %s154, 1
      %s156 = scalar_select %p153, %s154, %s155
      %p159 = pneg %p153
      %p160 = scmp.eq.s32.totalorder %s26, 1
      %p161 = por %p159, %p160
      %p162 = scmp.ne.s32.totalorder %s154, %s157
      %p163 = scmp.eq.s32.totalorder %s26, 0
      %p164 = por %p162, %p163
      %p165 = scmp.ne.s32.totalorder %s154, %s157
      %p166 = scmp.eq.s32.totalorder %s31, 1
      %p167 = por %p165, %p166
      %p168 = scmp.ne.s32.totalorder %s157, %s158
      %p169 = scmp.eq.s32.totalorder %s31, 0
      %p170 = por %p168, %p169
      %p171 = scmp.ne.s32.totalorder %s157, %s158
      %p172 = scmp.eq.s32.totalorder %s32, 1
      %p173 = por %p171, %p172
      %p175 = scmp.ne.s32.totalorder %s158, %s174
      %p176 = scmp.eq.s32.totalorder %s32, 0
      %p177 = por %p175, %p176
      %s178 = ssub.s32 1, %s33
      %s179 = smul.u32 %s34, %s178
      %s180 = ssub.s32 1, %s45
      %s181 = smul.u32 %s41, %s180
      %s182 = ssub.s32 %s179, %s181
      %p183 = scmp.eq.s32.totalorder %s182, 0
      %s185 = sadd.s32 %s184, 1
      %s186 = scalar_select %p183, %s184, %s185
      %p189 = pneg %p183
      %p190 = scmp.eq.s32.totalorder %s26, 1
      %p191 = por %p189, %p190
      %p192 = scmp.ne.s32.totalorder %s184, %s187
      %p193 = scmp.eq.s32.totalorder %s26, 0
      %p194 = por %p192, %p193
      %p195 = scmp.ne.s32.totalorder %s184, %s187
      %p196 = scmp.eq.s32.totalorder %s31, 1
      %p197 = por %p195, %p196
      %p198 = scmp.ne.s32.totalorder %s187, %s188
      %p199 = scmp.eq.s32.totalorder %s31, 0
      %p200 = por %p198, %p199
      %p201 = scmp.ne.s32.totalorder %s187, %s188
      %p202 = scmp.eq.s32.totalorder %s32, 1
      %p203 = por %p201, %p202
      %p205 = scmp.ne.s32.totalorder %s188, %s204
      %p206 = scmp.eq.s32.totalorder %s32, 0
      %p207 = por %p205, %p206
      %s209 = sadd.s32 %s208, 1
      %p212 = scmp.eq.s32.totalorder %s26, 1
      %p213 = scmp.ne.s32.totalorder %s208, %s210
      %p214 = scmp.eq.s32.totalorder %s26, 0
      %p215 = por %p213, %p214
      %p216 = scmp.ne.s32.totalorder %s208, %s210
      %p217 = scmp.eq.s32.totalorder %s31, 1
      %p218 = por %p216, %p217
      %p219 = scmp.ne.s32.totalorder %s210, %s211
      %p220 = scmp.eq.s32.totalorder %s31, 0
      %p221 = por %p219, %p220
      %p222 = scmp.ne.s32.totalorder %s210, %s211
      %p223 = scmp.eq.s32.totalorder %s32, 1
      %p224 = por %p222, %p223
      %p226 = scmp.ne.s32.totalorder %s211, %s225
      %p227 = scmp.eq.s32.totalorder %s32, 0
      %p228 = por %p226, %p227
      %s229 = smul.u32 %s34, %s33
      %s230 = smul.u32 %s41, %s45
      %s231 = ssub.s32 %s229, %s230
      %p232 = scmp.eq.s32.totalorder %s231, 0
      %s234 = sadd.s32 %s233, 1
      %s235 = scalar_select %p232, %s233, %s234
      %p238 = pneg %p232
      %p239 = scmp.eq.s32.totalorder %s26, 1
      %p240 = por %p238, %p239
      %p241 = scmp.ne.s32.totalorder %s233, %s236
      %p242 = scmp.eq.s32.totalorder %s26, 0
      %p243 = por %p241, %p242
      %p244 = scmp.ne.s32.totalorder %s233, %s236
      %p245 = scmp.eq.s32.totalorder %s31, 1
      %p246 = por %p244, %p245
      %p247 = scmp.ne.s32.totalorder %s236, %s237
      %p248 = scmp.eq.s32.totalorder %s31, 0
      %p249 = por %p247, %p248
      %p250 = scmp.ne.s32.totalorder %s236, %s237
      %p251 = scmp.eq.s32.totalorder %s32, 1
      %p252 = por %p250, %p251
      %p254 = scmp.ne.s32.totalorder %s237, %s253
      %p255 = scmp.eq.s32.totalorder %s32, 0
      %p256 = por %p254, %p255
      %s257 = smul.u32 %s34, %s33
      %s258 = smul.u32 %s41, %s45
      %s259 = ssub.s32 %s257, %s258
      %p260 = scmp.eq.s32.totalorder %s259, 0
      %s262 = sadd.s32 %s261, 1
      %s263 = scalar_select %p260, %s261, %s262
      %p266 = pneg %p260
      %p267 = scmp.eq.s32.totalorder %s26, 1
      %p268 = por %p266, %p267
      %p269 = scmp.ne.s32.totalorder %s261, %s264
      %p270 = scmp.eq.s32.totalorder %s26, 0
      %p271 = por %p269, %p270
      %p272 = scmp.ne.s32.totalorder %s261, %s264
      %p273 = scmp.eq.s32.totalorder %s31, 1
      %p274 = por %p272, %p273
      %p275 = scmp.ne.s32.totalorder %s264, %s265
      %p276 = scmp.eq.s32.totalorder %s31, 0
      %p277 = por %p275, %p276
      %p278 = scmp.ne.s32.totalorder %s264, %s265
      %p279 = scmp.eq.s32.totalorder %s32, 1
      %p280 = por %p278, %p279
      %p282 = scmp.ne.s32.totalorder %s265, %s281
      %p283 = scmp.eq.s32.totalorder %s32, 0
      %p284 = por %p282, %p283
      %s285 = smul.u32 %s34, %s33
      %s286 = smul.u32 %s41, %s45
      %s287 = ssub.s32 %s285, %s286
      %p288 = scmp.eq.s32.totalorder %s287, 0
      %s290 = sadd.s32 %s289, 1
      %s291 = scalar_select %p288, %s289, %s290
      %p294 = pneg %p288
      %p295 = scmp.eq.s32.totalorder %s26, 1
      %p296 = por %p294, %p295
      %p297 = scmp.ne.s32.totalorder %s289, %s292
      %p298 = scmp.eq.s32.totalorder %s26, 0
      %p299 = por %p297, %p298
      %p300 = scmp.ne.s32.totalorder %s289, %s292
      %p301 = scmp.eq.s32.totalorder %s31, 1
      %p302 = por %p300, %p301
      %p303 = scmp.ne.s32.totalorder %s292, %s293
      %p304 = scmp.eq.s32.totalorder %s31, 0
      %p305 = por %p303, %p304
      %p306 = scmp.ne.s32.totalorder %s292, %s293
      %p307 = scmp.eq.s32.totalorder %s32, 1
      %p308 = por %p306, %p307
      %p310 = scmp.ne.s32.totalorder %s293, %s309
      %p311 = scmp.eq.s32.totalorder %s32, 0
      %p312 = por %p310, %p311
      %s313 = smul.u32 %s34, %s33
      %s314 = smul.u32 %s41, %s45
      %s315 = ssub.s32 %s313, %s314
      %p316 = scmp.eq.s32.totalorder %s315, 0
      %s318 = sadd.s32 %s317, 1
      %s319 = scalar_select %p316, %s317, %s318
      %p322 = pneg %p316
      %p323 = scmp.eq.s32.totalorder %s26, 1
      %p324 = por %p322, %p323
      %p325 = scmp.ne.s32.totalorder %s317, %s320
      %p326 = scmp.eq.s32.totalorder %s26, 0
      %p327 = por %p325, %p326
      %p328 = scmp.ne.s32.totalorder %s317, %s320
      %p329 = scmp.eq.s32.totalorder %s31, 1
      %p330 = por %p328, %p329
      %p331 = scmp.ne.s32.totalorder %s320, %s321
      %p332 = scmp.eq.s32.totalorder %s31, 0
      %p333 = por %p331, %p332
      %p334 = scmp.ne.s32.totalorder %s320, %s321
      %p335 = scmp.eq.s32.totalorder %s32, 1
      %p336 = por %p334, %p335
      %p338 = scmp.ne.s32.totalorder %s321, %s337
      %p339 = scmp.eq.s32.totalorder %s32, 0
      %p340 = por %p338, %p339
      %s342 = sadd.s32 %s341, 1
      %p345 = scmp.eq.s32.totalorder %s26, 1
      %p346 = scmp.ne.s32.totalorder %s341, %s343
      %p347 = scmp.eq.s32.totalorder %s26, 0
      %p348 = por %p346, %p347
      %p349 = scmp.ne.s32.totalorder %s341, %s343
      %p350 = scmp.eq.s32.totalorder %s31, 1
      %p351 = por %p349, %p350
      %p352 = scmp.ne.s32.totalorder %s343, %s344
      %p353 = scmp.eq.s32.totalorder %s31, 0
      %p354 = por %p352, %p353
      %p355 = scmp.ne.s32.totalorder %s343, %s344
      %p356 = scmp.eq.s32.totalorder %s32, 1
      %p357 = por %p355, %p356
      %p359 = scmp.ne.s32.totalorder %s344, %s358
      %p360 = scmp.eq.s32.totalorder %s32, 0
      %p361 = por %p359, %p360
      %s363 = sadd.s32 %s362, 1
      %p366 = scmp.eq.s32.totalorder %s26, 1
      %p367 = scmp.ne.s32.totalorder %s362, %s364
      %p368 = scmp.eq.s32.totalorder %s26, 0
      %p369 = por %p367, %p368
      %p370 = scmp.ne.s32.totalorder %s362, %s364
      %p371 = scmp.eq.s32.totalorder %s31, 1
      %p372 = por %p370, %p371
      %p373 = scmp.ne.s32.totalorder %s364, %s365
      %p374 = scmp.eq.s32.totalorder %s31, 0
      %p375 = por %p373, %p374
      %p376 = scmp.ne.s32.totalorder %s364, %s365
      %p377 = scmp.eq.s32.totalorder %s32, 1
      %p378 = por %p376, %p377
      %p380 = scmp.ne.s32.totalorder %s365, %s379
      %p381 = scmp.eq.s32.totalorder %s32, 0
      %p382 = por %p380, %p381
      %s384 = sadd.s32 %s383, 1
      %p387 = scmp.eq.s32.totalorder %s26, 1
      %p388 = scmp.ne.s32.totalorder %s383, %s385
      %p389 = scmp.eq.s32.totalorder %s26, 0
      %p390 = por %p388, %p389
      %p391 = scmp.ne.s32.totalorder %s383, %s385
      %p392 = scmp.eq.s32.totalorder %s31, 1
      %p393 = por %p391, %p392
      %p394 = scmp.ne.s32.totalorder %s385, %s386
      %p395 = scmp.eq.s32.totalorder %s31, 0
      %p396 = por %p394, %p395
      %p397 = scmp.ne.s32.totalorder %s385, %s386
      %p398 = scmp.eq.s32.totalorder %s32, 1
      %p399 = por %p397, %p398
      %p401 = scmp.ne.s32.totalorder %s386, %s400
      %p402 = scmp.eq.s32.totalorder %s32, 0
      %p403 = por %p401, %p402
      %p404 = scmp.le.s32.totalorder 1, %s26
      %p405 = scmp.lt.s32.totalorder %s26, 3
      %p406 = pnand %p404, %p405
      %p407 = pneg %p406
      // Predicated region
      $region9: #{siamese_arm_forward.3} parent=5 // pred_check
        _
      $region10: #{siamese_arm_forward.3} parent=5 // pred_check_branch
        %409 = sbr.rel (%p406) target = $region12
      $region11: #{siamese_arm_forward.3} parent=5 // pred_region
        %s410 = ssub.s32 %s26, 1
        // Predicated region
        $region13: #{siamese_arm_forward.3} parent=11 // pred_check
          %p411 = pneg %p59
        $region14: #{siamese_arm_forward.3} parent=11 // pred_check_branch
          %413 = sbr.rel (%p411) target = $region16
        $region15: #{siamese_arm_forward.3} parent=11 // pred_region
          _
        $region16: #{siamese_arm_forward.3} parent=11 // pred_fallthru
          _
        // Predicated region
        $region17: #{siamese_arm_forward.3} parent=11 // pred_check
          %p414 = pneg %p80
        $region18: #{siamese_arm_forward.3} parent=11 // pred_check_branch
          %416 = sbr.rel (%p414) target = $region20
        $region19: #{siamese_arm_forward.3} parent=11 // pred_region
          _
        $region20: #{siamese_arm_forward.3} parent=11 // pred_fallthru
          _
        // Predicated region
        $region21: #{siamese_arm_forward.3} parent=11 // pred_check
          %p417 = pneg %p221
        $region22: #{siamese_arm_forward.3} parent=11 // pred_check_branch
          %419 = sbr.rel (%p417) target = $region24
        $region23: #{siamese_arm_forward.3} parent=11 // pred_region
          _
        $region24: #{siamese_arm_forward.3} parent=11 // pred_fallthru
          _
        // Predicated region
        $region25: #{siamese_arm_forward.3} parent=11 // pred_check
          %p420 = pneg %p354
        $region26: #{siamese_arm_forward.3} parent=11 // pred_check_branch
          %422 = sbr.rel (%p420) target = $region28
        $region27: #{siamese_arm_forward.3} parent=11 // pred_region
          _
        $region28: #{siamese_arm_forward.3} parent=11 // pred_fallthru
          _
      $region12: #{siamese_arm_forward.3} parent=5 // pred_fallthru
        _
      %p423 = scmp.lt.s32.totalorder %s26, 2
      // Predicated region
      $region29: #{siamese_arm_forward.3} parent=5 // pred_check
        %p424 = pneg %p423
      $region30: #{siamese_arm_forward.3} parent=5 // pred_check_branch
        %426 = sbr.rel (%p424) target = $region32
      $region31: #{siamese_arm_forward.3} parent=5 // pred_region
        // Predicated region
        $region33: #{siamese_arm_forward.3} parent=31 // pred_check
          %p427 = pneg %p104
        $region34: #{siamese_arm_forward.3} parent=31 // pred_check_branch
          %429 = sbr.rel (%p427) target = $region36
        $region35: #{siamese_arm_forward.3} parent=31 // pred_region
          %s430 = ssub.s32 1, %s33
          %s431 = smul.u32 %s34, %s430
          %s432 = smul.u32 2, %s431
          %p433 = scmp.lt.s32.totalorder %s432, 1
          %s434 = scalar_select %p433, %s432, 1
          %s435 = smul.addr %s434, 4
          %s436 = scalar_lea.vmem %s2, %s435
          %s437 = ssub.s32 1, %s33
          %s438 = smul.u32 %s34, %s437
          %s439 = smul.u32 2, %s438
        $region36: #{siamese_arm_forward.3} parent=31 // pred_fallthru
          _
        // Predicated region
        $region37: #{siamese_arm_forward.3} parent=31 // pred_check
          %p440 = pneg %p134
        $region38: #{siamese_arm_forward.3} parent=31 // pred_check_branch
          %442 = sbr.rel (%p440) target = $region40
        $region39: #{siamese_arm_forward.3} parent=31 // pred_region
          %s443 = ssub.s32 1, %s33
          %s444 = smul.u32 %s34, %s443
          %s445 = smul.u32 2, %s444
          %p446 = scmp.lt.s32.totalorder %s445, 1
          %s447 = scalar_select %p446, %s445, 1
          %s448 = scalar_lea.vmem %s3, %s447
          %s449 = ssub.s32 1, %s33
          %s450 = smul.u32 %s34, %s449
          %s451 = smul.u32 2, %s450
        $region40: #{siamese_arm_forward.3} parent=31 // pred_fallthru
          _
        // Predicated region
        $region41: #{siamese_arm_forward.3} parent=31 // pred_check
          %p452 = pneg %p164
        $region42: #{siamese_arm_forward.3} parent=31 // pred_check_branch
          %454 = sbr.rel (%p452) target = $region44
        $region43: #{siamese_arm_forward.3} parent=31 // pred_region
          %s455 = ssub.s32 1, %s33
          %s456 = smul.u32 %s34, %s455
          %s457 = smul.u32 2, %s456
          %p458 = scmp.lt.s32.totalorder %s457, 1
          %s459 = scalar_select %p458, %s457, 1
          %s460 = scalar_lea.vmem %s4, %s459
          %s461 = ssub.s32 1, %s33
          %s462 = smul.u32 %s34, %s461
          %s463 = smul.u32 2, %s462
        $region44: #{siamese_arm_forward.3} parent=31 // pred_fallthru
          _
        // Predicated region
        $region45: #{siamese_arm_forward.3} parent=31 // pred_check
          %p464 = pneg %p194
        $region46: #{siamese_arm_forward.3} parent=31 // pred_check_branch
          %466 = sbr.rel (%p464) target = $region48
        $region47: #{siamese_arm_forward.3} parent=31 // pred_region
          %s467 = ssub.s32 1, %s33
          %s468 = smul.u32 %s34, %s467
          %s469 = smul.u32 32, %s468
          %p470 = scmp.lt.s32.totalorder %s469, 31
          %s471 = scalar_select %p470, %s469, 31
          %s472 = smul.addr %s471, 4
          %s473 = scalar_lea.vmem %s5, %s472
          %s474 = ssub.s32 1, %s33
          %s475 = smul.u32 %s34, %s474
          %s476 = smul.u32 32, %s475
        $region48: #{siamese_arm_forward.3} parent=31 // pred_fallthru
          _
        // Predicated region
        $region49: #{siamese_arm_forward.3} parent=31 // pred_check
          %p477 = pneg %p243
        $region50: #{siamese_arm_forward.3} parent=31 // pred_check_branch
          %479 = sbr.rel (%p477) target = $region52
        $region51: #{siamese_arm_forward.3} parent=31 // pred_region
          %s480 = sand.u32 %s233, 1
          %s481 = scalar_lea.sflag [#allocation3], %s480
          %s482 = sand.u32 %s233, 1
          %s483 = smul.addr %s482, 128
          %s484 = scalar_lea.vmem [#allocation2], %s483
          %s485 = smul.u32 %s34, %s33
          %s486 = smul.u32 2, %s485
          %488 = vsyncadd %s481, 0
          %s489 = smul.addr %s486, 4
          %s490 = scalar_lea.hbm %s7, %s489
          %s491 = sshll.u32 %s490, 4
          %s492 = int_to_ptr.hbm [resolvable:$true] %s491
          %s493 = sshll.u32 %s484, 4
          %s494 = int_to_ptr.vmem [resolvable:$true] %s493
          %499 = dma.hbm_to_vmem [thread:$0]  %s492, 2048, %s494, %s481, 128, 128, 8
        $region52: #{siamese_arm_forward.3} parent=31 // pred_fallthru
          _
        // Predicated region
        $region53: #{siamese_arm_forward.3} parent=31 // pred_check
          %p500 = pneg %p271
        $region54: #{siamese_arm_forward.3} parent=31 // pred_check_branch
          %502 = sbr.rel (%p500) target = $region56
        $region55: #{siamese_arm_forward.3} parent=31 // pred_region
          %s503 = smul.u32 %s34, %s33
          %s504 = smul.u32 2, %s503
          %p505 = scmp.lt.s32.totalorder %s504, 1
          %s506 = scalar_select %p505, %s504, 1
          %s507 = scalar_lea.vmem %s8, %s506
          %s508 = smul.u32 %s34, %s33
          %s509 = smul.u32 2, %s508
        $region56: #{siamese_arm_forward.3} parent=31 // pred_fallthru
          _
        // Predicated region
        $region57: #{siamese_arm_forward.3} parent=31 // pred_check
          %p510 = pneg %p299
        $region58: #{siamese_arm_forward.3} parent=31 // pred_check_branch
          %512 = sbr.rel (%p510) target = $region60
        $region59: #{siamese_arm_forward.3} parent=31 // pred_region
          %s513 = smul.u32 %s34, %s33
          %s514 = smul.u32 2, %s513
          %p515 = scmp.lt.s32.totalorder %s514, 1
          %s516 = scalar_select %p515, %s514, 1
          %s517 = scalar_lea.vmem %s9, %s516
          %s518 = smul.u32 %s34, %s33
          %s519 = smul.u32 2, %s518
        $region60: #{siamese_arm_forward.3} parent=31 // pred_fallthru
          _
        // Predicated region
        $region61: #{siamese_arm_forward.3} parent=31 // pred_check
          %p520 = pneg %p327
        $region62: #{siamese_arm_forward.3} parent=31 // pred_check_branch
          %522 = sbr.rel (%p520) target = $region64
        $region63: #{siamese_arm_forward.3} parent=31 // pred_region
          %s523 = sand.u32 %s317, 1
          %s524 = scalar_lea.sflag [#allocation5], %s523
          %s525 = sand.u32 %s317, 1
          %s526 = smul.addr %s525, 128
          %s527 = scalar_lea.vmem [#allocation4], %s526
          %s528 = smul.u32 %s34, %s33
          %s529 = smul.u32 32, %s528
          %531 = vsyncadd %s524, 0
          %s532 = smul.addr %s529, 4
          %s533 = scalar_lea.hbm %s10, %s532
          %s534 = sshll.u32 %s533, 4
          %s535 = int_to_ptr.hbm [resolvable:$true] %s534
          %s536 = sshll.u32 %s527, 4
          %s537 = int_to_ptr.vmem [resolvable:$true] %s536
          %542 = dma.hbm_to_vmem [thread:$0]  %s535, 2048, %s537, %s524, 64, 64, 4
        $region64: #{siamese_arm_forward.3} parent=31 // pred_fallthru
          _
      $region32: #{siamese_arm_forward.3} parent=5 // pred_fallthru
        _
      %p543 = scmp.le.s32.totalorder 1, %s26
      %p544 = scmp.lt.s32.totalorder %s26, 3
      %p545 = pnand %p543, %p544
      %p546 = pneg %p545
      // Predicated region
      $region65: #{siamese_arm_forward.3} parent=5 // pred_check
        _
      $region66: #{siamese_arm_forward.3} parent=5 // pred_check_branch
        %548 = sbr.rel (%p545) target = $region68
      $region67: #{siamese_arm_forward.3} parent=5 // pred_region
        %s549 = ssub.s32 %s26, 1
        %s550 = sand.u32 %s236, 1
        %s551 = scalar_lea.sflag [#allocation3], %s550
        %s552 = sand.u32 %s236, 1
        %s553 = smul.addr %s552, 128
        %s554 = scalar_lea.vmem [#allocation2], %s553
        // Predicated region
        $region69: #{siamese_arm_forward.3} parent=67 // pred_check
          %p555 = pneg %p249
        $region70: #{siamese_arm_forward.3} parent=67 // pred_check_branch
          %557 = sbr.rel (%p555) target = $region72
        $region71: #{siamese_arm_forward.3} parent=67 // pred_region
          %559 = dma.done %s551, 2048
        $region72: #{siamese_arm_forward.3} parent=67 // pred_fallthru
          _
        %s560 = sand.u32 %s320, 1
        %s561 = scalar_lea.sflag [#allocation5], %s560
        %s562 = sand.u32 %s320, 1
        %s563 = smul.addr %s562, 128
        %s564 = scalar_lea.vmem [#allocation4], %s563
        // Predicated region
        $region73: #{siamese_arm_forward.3} parent=67 // pred_check
          %p565 = pneg %p333
        $region74: #{siamese_arm_forward.3} parent=67 // pred_check_branch
          %567 = sbr.rel (%p565) target = $region76
        $region75: #{siamese_arm_forward.3} parent=67 // pred_region
          %569 = dma.done %s561, 2048
        $region76: #{siamese_arm_forward.3} parent=67 // pred_fallthru
          _
        %p570 = pneg %p59
        %p571 = pneg %p56
        %p572 = pneg %p80
        %p573 = pneg %p77
        %s574 = ssub.s32 1, %s35
        %s575 = smul.u32 %s36, %s574
        %s576 = smul.u32 2, %s575
        %p577 = scmp.lt.s32.totalorder %s576, 1
        %s578 = scalar_select %p577, %s576, 1
        %s579 = smul.addr %s578, 4
        %s580 = scalar_lea.vmem %s2, %s579
        %p581 = pneg %p110
        %p582 = pneg %p107
        %s583 = ssub.s32 1, %s35
        %s584 = smul.u32 %s36, %s583
        %s585 = smul.u32 2, %s584
        %p586 = scmp.lt.s32.totalorder %s585, 1
        %s587 = scalar_select %p586, %s585, 1
        %s588 = scalar_lea.vmem %s3, %s587
        %p589 = pneg %p140
        %p590 = pneg %p137
        %s591 = ssub.s32 1, %s35
        %s592 = smul.u32 %s36, %s591
        %s593 = smul.u32 2, %s592
        %p594 = scmp.lt.s32.totalorder %s593, 1
        %s595 = scalar_select %p594, %s593, 1
        %s596 = scalar_lea.vmem %s4, %s595
        %p597 = pneg %p170
        %p598 = pneg %p167
        %s599 = ssub.s32 1, %s35
        %s600 = smul.u32 %s36, %s599
        %s601 = smul.u32 32, %s600
        %p602 = scmp.lt.s32.totalorder %s601, 31
        %s603 = scalar_select %p602, %s601, 31
        %s604 = smul.addr %s603, 4
        %s605 = scalar_lea.vmem %s5, %s604
        %p606 = pneg %p200
        %p607 = pneg %p197
        %p608 = pneg %p221
        %p609 = pneg %p218
        %s610 = sand.u32 %s236, 1
        %s611 = scalar_lea.sflag [#allocation3], %s610
        %s612 = sand.u32 %s236, 1
        %s613 = smul.addr %s612, 128
        %s614 = scalar_lea.vmem [#allocation2], %s613
        %p615 = pneg %p249
        %p616 = pneg %p246
        %s617 = smul.u32 %s36, %s35
        %s618 = smul.u32 2, %s617
        %p619 = scmp.lt.s32.totalorder %s618, 1
        %s620 = scalar_select %p619, %s618, 1
        %s621 = scalar_lea.vmem %s8, %s620
        %p622 = pneg %p277
        %p623 = pneg %p274
        %s624 = smul.u32 %s36, %s35
        %s625 = smul.u32 2, %s624
        %p626 = scmp.lt.s32.totalorder %s625, 1
        %s627 = scalar_select %p626, %s625, 1
        %s628 = scalar_lea.vmem %s9, %s627
        %p629 = pneg %p305
        %p630 = pneg %p302
        %s631 = sand.u32 %s320, 1
        %s632 = scalar_lea.sflag [#allocation5], %s631
        %s633 = sand.u32 %s320, 1
        %s634 = smul.addr %s633, 128
        %s635 = scalar_lea.vmem [#allocation4], %s634
        %p636 = pneg %p333
        %p637 = pneg %p330
        %p638 = pneg %p354
        %p639 = pneg %p351
        %p640 = pneg %p375
        %p641 = pneg %p372
        %p642 = pneg %p396
        %p643 = pneg %p393
        %s644 = ssub.s32 1, %s35
        %s645 = smul.u32 %s36, %s644
        %s646 = smul.u32 2, %s645
        %p647 = scmp.lt.s32.totalorder %s646, 1
        %s648 = scalar_select %p647, %s646, 1
        %s649 = smul.addr %s648, 4
        %s650 = scalar_lea.vmem %s2, %s649
        %s651 = ssub.s32 1, %s35
        %s652 = smul.u32 %s36, %s651
        %s653 = smul.u32 2, %s652
        %s654 = ssub.s32 1, %s35
        %s655 = smul.u32 %s36, %s654
        %s656 = smul.u32 2, %s655
        %p657 = scmp.lt.s32.totalorder %s656, 1
        %s658 = scalar_select %p657, %s656, 1
        %s659 = scalar_lea.vmem %s3, %s658
        %s660 = ssub.s32 1, %s35
        %s661 = smul.u32 %s36, %s660
        %s662 = smul.u32 2, %s661
        %s663 = ssub.s32 1, %s35
        %s664 = smul.u32 %s36, %s663
        %s665 = smul.u32 2, %s664
        %p666 = scmp.lt.s32.totalorder %s665, 1
        %s667 = scalar_select %p666, %s665, 1
        %s668 = scalar_lea.vmem %s4, %s667
        %s669 = ssub.s32 1, %s35
        %s670 = smul.u32 %s36, %s669
        %s671 = smul.u32 2, %s670
        %s672 = ssub.s32 1, %s35
        %s673 = smul.u32 %s36, %s672
        %s674 = smul.u32 32, %s673
        %p675 = scmp.lt.s32.totalorder %s674, 31
        %s676 = scalar_select %p675, %s674, 31
        %s677 = smul.addr %s676, 4
        %s678 = scalar_lea.vmem %s5, %s677
        %s679 = ssub.s32 1, %s35
        %s680 = smul.u32 %s36, %s679
        %s681 = smul.u32 32, %s680
        %s682 = smul.u32 %s36, %s35
        %s683 = smul.u32 2, %s682
        %s684 = smul.u32 %s36, %s35
        %s685 = smul.u32 2, %s684
        %p686 = scmp.lt.s32.totalorder %s685, 1
        %s687 = scalar_select %p686, %s685, 1
        %s688 = scalar_lea.vmem %s8, %s687
        %s689 = smul.u32 %s36, %s35
        %s690 = smul.u32 2, %s689
        %s691 = smul.u32 %s36, %s35
        %s692 = smul.u32 2, %s691
        %p693 = scmp.lt.s32.totalorder %s692, 1
        %s694 = scalar_select %p693, %s692, 1
        %s695 = scalar_lea.vmem %s9, %s694
        %s696 = smul.u32 %s36, %s35
        %s697 = smul.u32 2, %s696
        %s698 = smul.u32 %s36, %s35
        %s699 = smul.u32 32, %s698
        %v700 = vld [vmem:[%s1] sm:$0xff]
        %v701 = vld [vmem:[%s1 + $0x8] sm:$0xff]
        %p702 = scmp.eq.s32.totalorder %s35, 0
        %p703 = scmp.eq.s32.totalorder %s36, 0
        %p704 = pnand %p702, %p703
        %p705 = pneg %p704
        // Predicated region
        $region77: #{siamese_arm_forward.3} parent=67 // pred_check
          _
        $region78: #{siamese_arm_forward.3} parent=67 // pred_check_branch
          %707 = sbr.rel (%p704) target = $region80
        $region79: #{siamese_arm_forward.3} parent=67 // pred_region
          %v708 = vld [vmem:[%s6] sm:$0x1]
          %v710 = vperm.slane %v708, 0
          %712 = vst [vmem:[%s12] sm:$0xff] %v710
          %713 = vst [vmem:[%s12 + $0x8] sm:$0xff] %v710
        $region80: #{siamese_arm_forward.3} parent=67 // pred_fallthru
          _
        %p714 = scmp.eq.s32.totalorder %s35, 1
        %p715 = pnand %p714, %p703
        %p716 = pneg %p715
        // Predicated region
        $region81: #{siamese_arm_forward.3} parent=67 // pred_check
          _
        $region82: #{siamese_arm_forward.3} parent=67 // pred_check_branch
          %718 = sbr.rel (%p715) target = $region84
        $region83: #{siamese_arm_forward.3} parent=67 // pred_region
          %v719 = vld [vmem:[%s11] sm:$0x1]
          %v721 = vperm.slane %v719, 0
          %723 = vst [vmem:[%s13] sm:$0xff] %v721
          %724 = vst [vmem:[%s13 + $0x8] sm:$0xff] %v721
        $region84: #{siamese_arm_forward.3} parent=67 // pred_fallthru
          _
        // Predicated region
        $region85: #{siamese_arm_forward.3} parent=67 // pred_check
          %p725 = pneg %p702
        $region86: #{siamese_arm_forward.3} parent=67 // pred_check_branch
          %727 = sbr.rel (%p725) target = $region88
        $region87: #{siamese_arm_forward.3} parent=67 // pred_region
          %v728 = vld [vmem:[%s0] sm:$0xf]
          %v729 = vld [vmem:[%s0 + $0x4] sm:$0xf]
          %v730 = vld [vmem:[%s650] sm:$0xff]
          %v731 = vld [vmem:[%s650 + $0x8] sm:$0xff]
          %v732 = vld [vmem:[%s650 + $0x10] sm:$0xff]
          %v733 = vld [vmem:[%s650 + $0x18] sm:$0xff]
          %v734 = vld [vmem:[%s650 + $0x20] sm:$0xff]
          %v735 = vld [vmem:[%s650 + $0x28] sm:$0xff]
          %v736 = vld [vmem:[%s650 + $0x30] sm:$0xff]
          %v737 = vld [vmem:[%s650 + $0x38] sm:$0xff]
          %v738 = vld [vmem:[%s650 + $0x40] sm:$0xff]
          %v739 = vld [vmem:[%s650 + $0x48] sm:$0xff]
          %v740 = vld [vmem:[%s650 + $0x50] sm:$0xff]
          %v741 = vld [vmem:[%s650 + $0x58] sm:$0xff]
          %v742 = vld [vmem:[%s650 + $0x60] sm:$0xff]
          %v743 = vld [vmem:[%s650 + $0x68] sm:$0xff]
          %v744 = vld [vmem:[%s650 + $0x70] sm:$0xff]
          %v745 = vld [vmem:[%s650 + $0x78] sm:$0xff]
          %v748 = vunpack.c.l.b16 %v728
          %v749 = vunpack.c.l.b16 %v729
          %v750 = vpack.c.b16 %v749, %v748
          %v768 = vunpack.c.l.b16 %v730
          %v769 = vunpack.c.h.b16 %v730
          %v770 = vunpack.c.l.b16 %v731
          %v771 = vunpack.c.h.b16 %v731
          %v772 = vunpack.c.l.b16 %v732
          %v773 = vunpack.c.h.b16 %v732
          %v774 = vunpack.c.l.b16 %v733
          %v775 = vunpack.c.h.b16 %v733
          %v776 = vunpack.c.l.b16 %v734
          %v777 = vunpack.c.h.b16 %v734
          %v778 = vunpack.c.l.b16 %v735
          %v779 = vunpack.c.h.b16 %v735
          %v780 = vunpack.c.l.b16 %v736
          %v781 = vunpack.c.h.b16 %v736
          %v782 = vunpack.c.l.b16 %v737
          %v783 = vunpack.c.h.b16 %v737
          %v784 = vunpack.c.l.b16 %v738
          %v785 = vunpack.c.h.b16 %v738
          %v786 = vunpack.c.l.b16 %v739
          %v787 = vunpack.c.h.b16 %v739
          %v788 = vunpack.c.l.b16 %v740
          %v789 = vunpack.c.h.b16 %v740
          %v790 = vunpack.c.l.b16 %v741
          %v791 = vunpack.c.h.b16 %v741
          %v792 = vunpack.c.l.b16 %v742
          %v793 = vunpack.c.h.b16 %v742
          %v794 = vunpack.c.l.b16 %v743
          %v795 = vunpack.c.h.b16 %v743
          %v796 = vunpack.c.l.b16 %v744
          %v797 = vunpack.c.h.b16 %v744
          %v798 = vunpack.c.l.b16 %v745
          %v799 = vunpack.c.h.b16 %v745
          %v800 = vpack.c.b16 %v770, %v768
          %v801 = vpack.c.b16 %v771, %v769
          %v802 = vpack.c.b16 %v774, %v772
          %v803 = vpack.c.b16 %v775, %v773
          %v804 = vpack.c.b16 %v778, %v776
          %v805 = vpack.c.b16 %v779, %v777
          %v806 = vpack.c.b16 %v782, %v780
          %v807 = vpack.c.b16 %v783, %v781
          %v808 = vpack.c.b16 %v786, %v784
          %v809 = vpack.c.b16 %v787, %v785
          %v810 = vpack.c.b16 %v790, %v788
          %v811 = vpack.c.b16 %v791, %v789
          %v812 = vpack.c.b16 %v794, %v792
          %v813 = vpack.c.b16 %v795, %v793
          %v814 = vpack.c.b16 %v798, %v796
          %v815 = vpack.c.b16 %v799, %v797
          %832 = vmatpush.bf16.msra.mxu0 %v814
          %833 = vmatpush.bf16.msra.mxu0 %v812
          %834 = vmatpush.bf16.msra.mxu0 %v810
          %835 = vmatpush.bf16.msra.mxu0 %v808
          %836 = vmatpush.bf16.msra.mxu0 %v806
          %837 = vmatpush.bf16.msra.mxu0 %v804
          %838 = vmatpush.bf16.msra.mxu0 %v802
          %839 = vmatpush.bf16.msra.mxu0 %v800
          %840 = vmatmul.bf16.gmra.mxu0 %v750
          %v841 = vpop.f32.mrf.mxu0
          %v842 = vadd.f32 0.0, %v841
          %v843 = vpop.f32.mrf.mxu0
          %v844 = vadd.f32 0.0, %v843
          %845 = vdwg.mxu0
          %846 = vmatpush.bf16.msra.mxu0 %v815
          %847 = vmatpush.bf16.msra.mxu0 %v813
          %848 = vmatpush.bf16.msra.mxu0 %v811
          %849 = vmatpush.bf16.msra.mxu0 %v809
          %850 = vmatpush.bf16.msra.mxu0 %v807
          %851 = vmatpush.bf16.msra.mxu0 %v805
          %852 = vmatpush.bf16.msra.mxu0 %v803
          %853 = vmatpush.bf16.msra.mxu0 %v801
          %854 = vmatmul.bf16.gmra.mxu0 %v750
          %v855 = vpop.f32.mrf.mxu0
          %v856 = vadd.f32 0.0, %v855
          %v857 = vpop.f32.mrf.mxu0
          %v858 = vadd.f32 0.0, %v857
          %859 = vdwg.mxu0
          %v860 = vld [vmem:[%s659] sm:$0x3]
          %v861 = vld [vmem:[%s668] sm:$0x3]
          %863 = vset.pattern.permute.xlu0 0
          %864 = vperm.xlu0 %863, %v700
          %v865 = vpop.permute.xlu0 %864
          %868 = vset.pattern.permute.xlu0 0
          %869 = vperm.xlu0 %868, %v701
          %v870 = vpop.permute.xlu0 %869
          %v872 = vmul.f32 %v842, %v865
          %v873 = vmul.f32 %v856, %v865
          %v874 = vmul.f32 %v844, %v870
          %v875 = vmul.f32 %v858, %v870
          %v876 = vadd.f32 %v872, %v874
          %v877 = vrot.slane %v876, 4
          %v878 = vadd.f32 %v876, %v877
          %v879 = vrot.slane %v878, 2
          %v880 = vadd.f32 %v878, %v879
          %v881 = vrot.slane %v880, 1
          %v882 = vadd.f32 %v880, %v881
          %v883 = vadd.f32 %v873, %v875
          %v884 = vrot.slane %v883, 4
          %v885 = vadd.f32 %v883, %v884
          %v886 = vrot.slane %v885, 2
          %v887 = vadd.f32 %v885, %v886
          %v888 = vrot.slane %v887, 1
          %v889 = vadd.f32 %v887, %v888
          %v890 = vmul.f32 %v842, %v842
          %v891 = vmul.f32 %v856, %v856
          %v892 = vmul.f32 %v844, %v844
          %v893 = vmul.f32 %v858, %v858
          %v894 = vmul.f32 %v890, %v865
          %v895 = vmul.f32 %v891, %v865
          %v896 = vmul.f32 %v892, %v870
          %v897 = vmul.f32 %v893, %v870
          %v898 = vadd.f32 %v894, %v896
          %v899 = vrot.slane %v898, 4
          %v900 = vadd.f32 %v898, %v899
          %v901 = vrot.slane %v900, 2
          %v902 = vadd.f32 %v900, %v901
          %v903 = vrot.slane %v902, 1
          %v904 = vadd.f32 %v902, %v903
          %v905 = vadd.f32 %v895, %v897
          %v906 = vrot.slane %v905, 4
          %v907 = vadd.f32 %v905, %v906
          %v908 = vrot.slane %v907, 2
          %v909 = vadd.f32 %v907, %v908
          %v910 = vrot.slane %v909, 1
          %v911 = vadd.f32 %v909, %v910
          %v912 = vmul.f32 %v882, %v882
          %v913 = vmul.f32 %v889, %v889
          %v914 = vsub.f32 %v904, %v912
          %v915 = vsub.f32 %v911, %v913
          %v916 = vmax.f32 %v914, 0.0
          %v917 = vmax.f32 %v915, 0.0
          %v918 = vadd.f32 %v916, 1e-05
          %v919 = vadd.f32 %v917, 1e-05
          %v920 = vrsqrt.pop %v918
          %v921 = vmul.f32 %v920, %v918
          %v922 = vmul.f32 %v921, %v920
          %v923 = vmul.f32 0.5, %v922
          %v924 = vsub.f32 1.5, %v923
          %v925 = vmul.f32 %v920, %v924
          %vm926 = vweird.f32 %v918
          %vm927 = vweird.f32 %v920
          %vm928 = vmor %vm926, %vm927
          %v929 = vsel %vm928, %v920, %v925
          %v930 = vrsqrt.pop %v919
          %v931 = vmul.f32 %v930, %v919
          %v932 = vmul.f32 %v931, %v930
          %v933 = vmul.f32 0.5, %v932
          %v934 = vsub.f32 1.5, %v933
          %v935 = vmul.f32 %v930, %v934
          %vm936 = vweird.f32 %v919
          %vm937 = vweird.f32 %v930
          %vm938 = vmor %vm936, %vm937
          %v939 = vsel %vm938, %v930, %v935
          %v942 = vrot.slane %v939, 7
          %vm943 = vcmask 1040384
          %v944 = vsel %vm943, %v929, %v942
          %v946 = vmul.f32 %v860, %v944
          %v948 = vperm.slane %v946, 0
          %v949 = vperm.slane %v946, 1
          %v952 = vmul.f32 %v882, %v948
          %v953 = vmul.f32 %v889, %v949
          %v956 = vrot.slane %v953, 7
          %v957 = vsel %vm943, %v952, %v956
          %v959 = vsub.f32 %v861, %v957
          %v960 = vmul.f32 %v842, %v948
          %v961 = vmul.f32 %v856, %v949
          %v962 = vmul.f32 %v844, %v948
          %v963 = vmul.f32 %v858, %v949
          %v965 = vperm.slane %v959, 0
          %v966 = vperm.slane %v959, 1
          %v969 = vadd.f32 %v960, %v965
          %v970 = vadd.f32 %v961, %v966
          %v971 = vadd.f32 %v962, %v965
          %v972 = vadd.f32 %v963, %v966
          %v973 = vmax.f32 %v969, 0.0
          %v974 = vmax.f32 %v970, 0.0
          %v975 = vmax.f32 %v971, 0.0
          %v976 = vmax.f32 %v972, 0.0
          %v977 = vld [vmem:[%s12] sm:$0xff]
          %v978 = vld [vmem:[%s12 + $0x8] sm:$0xff]
          %v979 = vpack.c.bf16 %v975, %v973
          %v980 = vpack.c.bf16 %v976, %v974
          %v981 = vld [vmem:[%s678] sm:$0xf]
          %v982 = vld [vmem:[%s678 + $0x4] sm:$0xf]
          %v983 = vld [vmem:[%s678 + $0x8] sm:$0xf]
          %v984 = vld [vmem:[%s678 + $0xc] sm:$0xf]
          %v985 = vld [vmem:[%s678 + $0x10] sm:$0xf]
          %v986 = vld [vmem:[%s678 + $0x14] sm:$0xf]
          %v987 = vld [vmem:[%s678 + $0x18] sm:$0xf]
          %v988 = vld [vmem:[%s678 + $0x1c] sm:$0xf]
          %v989 = vld [vmem:[%s678 + $0x20] sm:$0xf]
          %v990 = vld [vmem:[%s678 + $0x24] sm:$0xf]
          %v991 = vld [vmem:[%s678 + $0x28] sm:$0xf]
          %v992 = vld [vmem:[%s678 + $0x2c] sm:$0xf]
          %v993 = vld [vmem:[%s678 + $0x30] sm:$0xf]
          %v994 = vld [vmem:[%s678 + $0x34] sm:$0xf]
          %v995 = vld [vmem:[%s678 + $0x38] sm:$0xf]
          %v996 = vld [vmem:[%s678 + $0x3c] sm:$0xf]
          %v997 = vld [vmem:[%s678 + $0x40] sm:$0xf]
          %v998 = vld [vmem:[%s678 + $0x44] sm:$0xf]
          %v999 = vld [vmem:[%s678 + $0x48] sm:$0xf]
          %v1000 = vld [vmem:[%s678 + $0x4c] sm:$0xf]
          %v1001 = vld [vmem:[%s678 + $0x50] sm:$0xf]
          %v1002 = vld [vmem:[%s678 + $0x54] sm:$0xf]
          %v1003 = vld [vmem:[%s678 + $0x58] sm:$0xf]
          %v1004 = vld [vmem:[%s678 + $0x5c] sm:$0xf]
          %v1005 = vld [vmem:[%s678 + $0x60] sm:$0xf]
          %v1006 = vld [vmem:[%s678 + $0x64] sm:$0xf]
          %v1007 = vld [vmem:[%s678 + $0x68] sm:$0xf]
          %v1008 = vld [vmem:[%s678 + $0x6c] sm:$0xf]
          %v1009 = vld [vmem:[%s678 + $0x70] sm:$0xf]
          %v1010 = vld [vmem:[%s678 + $0x74] sm:$0xf]
          %v1011 = vld [vmem:[%s678 + $0x78] sm:$0xf]
          %v1012 = vld [vmem:[%s678 + $0x7c] sm:$0xf]
          %v1045 = vunpack.c.l.b16 %v981
          %v1046 = vunpack.c.l.b16 %v982
          %v1047 = vunpack.c.l.b16 %v983
          %v1048 = vunpack.c.l.b16 %v984
          %v1049 = vunpack.c.l.b16 %v985
          %v1050 = vunpack.c.l.b16 %v986
          %v1051 = vunpack.c.l.b16 %v987
          %v1052 = vunpack.c.l.b16 %v988
          %v1053 = vunpack.c.l.b16 %v989
          %v1054 = vunpack.c.l.b16 %v990
          %v1055 = vunpack.c.l.b16 %v991
          %v1056 = vunpack.c.l.b16 %v992
          %v1057 = vunpack.c.l.b16 %v993
          %v1058 = vunpack.c.l.b16 %v994
          %v1059 = vunpack.c.l.b16 %v995
          %v1060 = vunpack.c.l.b16 %v996
          %v1061 = vunpack.c.l.b16 %v997
          %v1062 = vunpack.c.l.b16 %v998
          %v1063 = vunpack.c.l.b16 %v999
          %v1064 = vunpack.c.l.b16 %v1000
          %v1065 = vunpack.c.l.b16 %v1001
          %v1066 = vunpack.c.l.b16 %v1002
          %v1067 = vunpack.c.l.b16 %v1003
          %v1068 = vunpack.c.l.b16 %v1004
          %v1069 = vunpack.c.l.b16 %v1005
          %v1070 = vunpack.c.l.b16 %v1006
          %v1071 = vunpack.c.l.b16 %v1007
          %v1072 = vunpack.c.l.b16 %v1008
          %v1073 = vunpack.c.l.b16 %v1009
          %v1074 = vunpack.c.l.b16 %v1010
          %v1075 = vunpack.c.l.b16 %v1011
          %v1076 = vunpack.c.l.b16 %v1012
          %v1077 = vpack.c.b16 %v1046, %v1045
          %v1078 = vpack.c.b16 %v1048, %v1047
          %v1079 = vpack.c.b16 %v1050, %v1049
          %v1080 = vpack.c.b16 %v1052, %v1051
          %v1081 = vpack.c.b16 %v1054, %v1053
          %v1082 = vpack.c.b16 %v1056, %v1055
          %v1083 = vpack.c.b16 %v1058, %v1057
          %v1084 = vpack.c.b16 %v1060, %v1059
          %v1085 = vpack.c.b16 %v1062, %v1061
          %v1086 = vpack.c.b16 %v1064, %v1063
          %v1087 = vpack.c.b16 %v1066, %v1065
          %v1088 = vpack.c.b16 %v1068, %v1067
          %v1089 = vpack.c.b16 %v1070, %v1069
          %v1090 = vpack.c.b16 %v1072, %v1071
          %v1091 = vpack.c.b16 %v1074, %v1073
          %v1092 = vpack.c.b16 %v1076, %v1075
          %1109 = vmatpush.bf16.msra.mxu0 %v1084
          %1110 = vmatpush.bf16.msra.mxu0 %v1083
          %1111 = vmatpush.bf16.msra.mxu0 %v1082
          %1112 = vmatpush.bf16.msra.mxu0 %v1081
          %1113 = vmatpush.bf16.msra.mxu0 %v1080
          %1114 = vmatpush.bf16.msra.mxu0 %v1079
          %1115 = vmatpush.bf16.msra.mxu0 %v1078
          %1116 = vmatpush.bf16.msra.mxu0 %v1077
          %1117 = vmatmul.bf16.gmra.mxu0 %v979
          %v1118 = vpop.f32.mrf.mxu0
          %v1119 = vadd.f32 0.0, %v1118
          %v1120 = vpop.f32.mrf.mxu0
          %v1121 = vadd.f32 0.0, %v1120
          %1122 = vdwg.mxu0
          %1123 = vmatpush.bf16.msra.mxu0 %v1092
          %1124 = vmatpush.bf16.msra.mxu0 %v1091
          %1125 = vmatpush.bf16.msra.mxu0 %v1090
          %1126 = vmatpush.bf16.msra.mxu0 %v1089
          %1127 = vmatpush.bf16.msra.mxu0 %v1088
          %1128 = vmatpush.bf16.msra.mxu0 %v1087
          %1129 = vmatpush.bf16.msra.mxu0 %v1086
          %1130 = vmatpush.bf16.msra.mxu0 %v1085
          %1131 = vmatmul.bf16.gmra.mxu0 %v980
          %v1132 = vpop.f32.mrf.mxu0
          %v1133 = vadd.f32 %v1119, %v1132
          %v1134 = vpop.f32.mrf.mxu0
          %v1135 = vadd.f32 %v1121, %v1134
          %1136 = vdwg.mxu0
          %v1137 = vadd.f32 %v977, %v1133
          %v1138 = vadd.f32 %v978, %v1135
          %1139 = vst [vmem:[%s12] sm:$0xff] %v1137
          %1140 = vst [vmem:[%s12 + $0x8] sm:$0xff] %v1138
        $region88: #{siamese_arm_forward.3} parent=67 // pred_fallthru
          _
        // Predicated region
        $region89: #{siamese_arm_forward.3} parent=67 // pred_check
          %p1141 = pneg %p714
        $region90: #{siamese_arm_forward.3} parent=67 // pred_check_branch
          %1143 = sbr.rel (%p1141) target = $region92
        $region91: #{siamese_arm_forward.3} parent=67 // pred_region
          %v1144 = vld [vmem:[%s12] sm:$0xff]
          %v1145 = vld [vmem:[%s12 + $0x8] sm:$0xff]
          %v1146 = vpack.c.bf16 %v1145, %v1144
          %v1147 = vld [vmem:[%s554] sm:$0xff]
          %v1148 = vld [vmem:[%s554 + $0x8] sm:$0xff]
          %v1149 = vld [vmem:[%s554 + $0x10] sm:$0xff]
          %v1150 = vld [vmem:[%s554 + $0x18] sm:$0xff]
          %v1151 = vld [vmem:[%s554 + $0x20] sm:$0xff]
          %v1152 = vld [vmem:[%s554 + $0x28] sm:$0xff]
          %v1153 = vld [vmem:[%s554 + $0x30] sm:$0xff]
          %v1154 = vld [vmem:[%s554 + $0x38] sm:$0xff]
          %v1155 = vld [vmem:[%s554 + $0x40] sm:$0xff]
          %v1156 = vld [vmem:[%s554 + $0x48] sm:$0xff]
          %v1157 = vld [vmem:[%s554 + $0x50] sm:$0xff]
          %v1158 = vld [vmem:[%s554 + $0x58] sm:$0xff]
          %v1159 = vld [vmem:[%s554 + $0x60] sm:$0xff]
          %v1160 = vld [vmem:[%s554 + $0x68] sm:$0xff]
          %v1161 = vld [vmem:[%s554 + $0x70] sm:$0xff]
          %v1162 = vld [vmem:[%s554 + $0x78] sm:$0xff]
          %v1179 = vunpack.c.l.b16 %v1147
          %v1180 = vunpack.c.h.b16 %v1147
          %v1181 = vunpack.c.l.b16 %v1148
          %v1182 = vunpack.c.h.b16 %v1148
          %v1183 = vunpack.c.l.b16 %v1149
          %v1184 = vunpack.c.h.b16 %v1149
          %v1185 = vunpack.c.l.b16 %v1150
          %v1186 = vunpack.c.h.b16 %v1150
          %v1187 = vunpack.c.l.b16 %v1151
          %v1188 = vunpack.c.h.b16 %v1151
          %v1189 = vunpack.c.l.b16 %v1152
          %v1190 = vunpack.c.h.b16 %v1152
          %v1191 = vunpack.c.l.b16 %v1153
          %v1192 = vunpack.c.h.b16 %v1153
          %v1193 = vunpack.c.l.b16 %v1154
          %v1194 = vunpack.c.h.b16 %v1154
          %v1195 = vunpack.c.l.b16 %v1155
          %v1196 = vunpack.c.h.b16 %v1155
          %v1197 = vunpack.c.l.b16 %v1156
          %v1198 = vunpack.c.h.b16 %v1156
          %v1199 = vunpack.c.l.b16 %v1157
          %v1200 = vunpack.c.h.b16 %v1157
          %v1201 = vunpack.c.l.b16 %v1158
          %v1202 = vunpack.c.h.b16 %v1158
          %v1203 = vunpack.c.l.b16 %v1159
          %v1204 = vunpack.c.h.b16 %v1159
          %v1205 = vunpack.c.l.b16 %v1160
          %v1206 = vunpack.c.h.b16 %v1160
          %v1207 = vunpack.c.l.b16 %v1161
          %v1208 = vunpack.c.h.b16 %v1161
          %v1209 = vunpack.c.l.b16 %v1162
          %v1210 = vunpack.c.h.b16 %v1162
          %v1211 = vpack.c.b16 %v1181, %v1179
          %v1212 = vpack.c.b16 %v1182, %v1180
          %v1213 = vpack.c.b16 %v1185, %v1183
          %v1214 = vpack.c.b16 %v1186, %v1184
          %v1215 = vpack.c.b16 %v1189, %v1187
          %v1216 = vpack.c.b16 %v1190, %v1188
          %v1217 = vpack.c.b16 %v1193, %v1191
          %v1218 = vpack.c.b16 %v1194, %v1192
          %v1219 = vpack.c.b16 %v1197, %v1195
          %v1220 = vpack.c.b16 %v1198, %v1196
          %v1221 = vpack.c.b16 %v1201, %v1199
          %v1222 = vpack.c.b16 %v1202, %v1200
          %v1223 = vpack.c.b16 %v1205, %v1203
          %v1224 = vpack.c.b16 %v1206, %v1204
          %v1225 = vpack.c.b16 %v1209, %v1207
          %v1226 = vpack.c.b16 %v1210, %v1208
          %1243 = vmatpush.bf16.msra.mxu0 %v1225
          %1244 = vmatpush.bf16.msra.mxu0 %v1223
          %1245 = vmatpush.bf16.msra.mxu0 %v1221
          %1246 = vmatpush.bf16.msra.mxu0 %v1219
          %1247 = vmatpush.bf16.msra.mxu0 %v1217
          %1248 = vmatpush.bf16.msra.mxu0 %v1215
          %1249 = vmatpush.bf16.msra.mxu0 %v1213
          %1250 = vmatpush.bf16.msra.mxu0 %v1211
          %1251 = vmatmul.bf16.gmra.mxu0 %v1146
          %v1252 = vpop.f32.mrf.mxu0
          %v1253 = vadd.f32 0.0, %v1252
          %v1254 = vpop.f32.mrf.mxu0
          %v1255 = vadd.f32 0.0, %v1254
          %1256 = vdwg.mxu0
          %1257 = vmatpush.bf16.msra.mxu0 %v1226
          %1258 = vmatpush.bf16.msra.mxu0 %v1224
          %1259 = vmatpush.bf16.msra.mxu0 %v1222
          %1260 = vmatpush.bf16.msra.mxu0 %v1220
          %1261 = vmatpush.bf16.msra.mxu0 %v1218
          %1262 = vmatpush.bf16.msra.mxu0 %v1216
          %1263 = vmatpush.bf16.msra.mxu0 %v1214
          %1264 = vmatpush.bf16.msra.mxu0 %v1212
          %1265 = vmatmul.bf16.gmra.mxu0 %v1146
          %v1266 = vpop.f32.mrf.mxu0
          %v1267 = vadd.f32 0.0, %v1266
          %v1268 = vpop.f32.mrf.mxu0
          %v1269 = vadd.f32 0.0, %v1268
          %1270 = vdwg.mxu0
          %v1271 = vld [vmem:[%s688] sm:$0x3]
          %v1272 = vld [vmem:[%s695] sm:$0x3]
          %1274 = vset.pattern.permute.xlu0 0
          %1275 = vperm.xlu0 %1274, %v700
          %v1276 = vpop.permute.xlu0 %1275
          %1279 = vset.pattern.permute.xlu0 0
          %1280 = vperm.xlu0 %1279, %v701
          %v1281 = vpop.permute.xlu0 %1280
          %v1283 = vmul.f32 %v1253, %v1276
          %v1284 = vmul.f32 %v1267, %v1276
          %v1285 = vmul.f32 %v1255, %v1281
          %v1286 = vmul.f32 %v1269, %v1281
          %v1287 = vadd.f32 %v1283, %v1285
          %v1288 = vrot.slane %v1287, 4
          %v1289 = vadd.f32 %v1287, %v1288
          %v1290 = vrot.slane %v1289, 2
          %v1291 = vadd.f32 %v1289, %v1290
          %v1292 = vrot.slane %v1291, 1
          %v1293 = vadd.f32 %v1291, %v1292
          %v1294 = vadd.f32 %v1284, %v1286
          %v1295 = vrot.slane %v1294, 4
          %v1296 = vadd.f32 %v1294, %v1295
          %v1297 = vrot.slane %v1296, 2
          %v1298 = vadd.f32 %v1296, %v1297
          %v1299 = vrot.slane %v1298, 1
          %v1300 = vadd.f32 %v1298, %v1299
          %v1301 = vmul.f32 %v1253, %v1253
          %v1302 = vmul.f32 %v1267, %v1267
          %v1303 = vmul.f32 %v1255, %v1255
          %v1304 = vmul.f32 %v1269, %v1269
          %v1305 = vmul.f32 %v1301, %v1276
          %v1306 = vmul.f32 %v1302, %v1276
          %v1307 = vmul.f32 %v1303, %v1281
          %v1308 = vmul.f32 %v1304, %v1281
          %v1309 = vadd.f32 %v1305, %v1307
          %v1310 = vrot.slane %v1309, 4
          %v1311 = vadd.f32 %v1309, %v1310
          %v1312 = vrot.slane %v1311, 2
          %v1313 = vadd.f32 %v1311, %v1312
          %v1314 = vrot.slane %v1313, 1
          %v1315 = vadd.f32 %v1313, %v1314
          %v1316 = vadd.f32 %v1306, %v1308
          %v1317 = vrot.slane %v1316, 4
          %v1318 = vadd.f32 %v1316, %v1317
          %v1319 = vrot.slane %v1318, 2
          %v1320 = vadd.f32 %v1318, %v1319
          %v1321 = vrot.slane %v1320, 1
          %v1322 = vadd.f32 %v1320, %v1321
          %v1323 = vmul.f32 %v1293, %v1293
          %v1324 = vmul.f32 %v1300, %v1300
          %v1325 = vsub.f32 %v1315, %v1323
          %v1326 = vsub.f32 %v1322, %v1324
          %v1327 = vmax.f32 %v1325, 0.0
          %v1328 = vmax.f32 %v1326, 0.0
          %v1329 = vadd.f32 %v1327, 1e-05
          %v1330 = vadd.f32 %v1328, 1e-05
          %v1331 = vrsqrt.pop %v1329
          %v1332 = vmul.f32 %v1331, %v1329
          %v1333 = vmul.f32 %v1332, %v1331
          %v1334 = vmul.f32 0.5, %v1333
          %v1335 = vsub.f32 1.5, %v1334
          %v1336 = vmul.f32 %v1331, %v1335
          %vm1337 = vweird.f32 %v1329
          %vm1338 = vweird.f32 %v1331
          %vm1339 = vmor %vm1337, %vm1338
          %v1340 = vsel %vm1339, %v1331, %v1336
          %v1341 = vrsqrt.pop %v1330
          %v1342 = vmul.f32 %v1341, %v1330
          %v1343 = vmul.f32 %v1342, %v1341
          %v1344 = vmul.f32 0.5, %v1343
          %v1345 = vsub.f32 1.5, %v1344
          %v1346 = vmul.f32 %v1341, %v1345
          %vm1347 = vweird.f32 %v1330
          %vm1348 = vweird.f32 %v1341
          %vm1349 = vmor %vm1347, %vm1348
          %v1350 = vsel %vm1349, %v1341, %v1346
          %v1353 = vrot.slane %v1350, 7
          %vm1354 = vcmask 1040384
          %v1355 = vsel %vm1354, %v1340, %v1353
          %v1357 = vmul.f32 %v1271, %v1355
          %v1359 = vperm.slane %v1357, 0
          %v1360 = vperm.slane %v1357, 1
          %v1363 = vmul.f32 %v1293, %v1359
          %v1364 = vmul.f32 %v1300, %v1360
          %v1367 = vrot.slane %v1364, 7
          %v1368 = vsel %vm1354, %v1363, %v1367
          %v1370 = vsub.f32 %v1272, %v1368
          %v1371 = vmul.f32 %v1253, %v1359
          %v1372 = vmul.f32 %v1267, %v1360
          %v1373 = vmul.f32 %v1255, %v1359
          %v1374 = vmul.f32 %v1269, %v1360
          %v1376 = vperm.slane %v1370, 0
          %v1377 = vperm.slane %v1370, 1
          %v1380 = vadd.f32 %v1371, %v1376
          %v1381 = vadd.f32 %v1372, %v1377
          %v1382 = vadd.f32 %v1373, %v1376
          %v1383 = vadd.f32 %v1374, %v1377
          %v1384 = vmax.f32 %v1380, 0.0
          %v1385 = vmax.f32 %v1381, 0.0
          %v1386 = vmax.f32 %v1382, 0.0
          %v1387 = vmax.f32 %v1383, 0.0
          %v1388 = vld [vmem:[%s13] sm:$0xff]
          %v1389 = vld [vmem:[%s13 + $0x8] sm:$0xff]
          %v1390 = vpack.c.bf16 %v1386, %v1384
          %v1391 = vpack.c.bf16 %v1387, %v1385
          %v1392 = vld [vmem:[%s564] sm:$0xf]
          %v1393 = vld [vmem:[%s564 + $0x4] sm:$0xf]
          %v1394 = vld [vmem:[%s564 + $0x8] sm:$0xf]
          %v1395 = vld [vmem:[%s564 + $0xc] sm:$0xf]
          %v1396 = vld [vmem:[%s564 + $0x10] sm:$0xf]
          %v1397 = vld [vmem:[%s564 + $0x14] sm:$0xf]
          %v1398 = vld [vmem:[%s564 + $0x18] sm:$0xf]
          %v1399 = vld [vmem:[%s564 + $0x1c] sm:$0xf]
          %v1400 = vld [vmem:[%s564 + $0x20] sm:$0xf]
          %v1401 = vld [vmem:[%s564 + $0x24] sm:$0xf]
          %v1402 = vld [vmem:[%s564 + $0x28] sm:$0xf]
          %v1403 = vld [vmem:[%s564 + $0x2c] sm:$0xf]
          %v1404 = vld [vmem:[%s564 + $0x30] sm:$0xf]
          %v1405 = vld [vmem:[%s564 + $0x34] sm:$0xf]
          %v1406 = vld [vmem:[%s564 + $0x38] sm:$0xf]
          %v1407 = vld [vmem:[%s564 + $0x3c] sm:$0xf]
          %v1408 = vld [vmem:[%s564 + $0x40] sm:$0xf]
          %v1409 = vld [vmem:[%s564 + $0x44] sm:$0xf]
          %v1410 = vld [vmem:[%s564 + $0x48] sm:$0xf]
          %v1411 = vld [vmem:[%s564 + $0x4c] sm:$0xf]
          %v1412 = vld [vmem:[%s564 + $0x50] sm:$0xf]
          %v1413 = vld [vmem:[%s564 + $0x54] sm:$0xf]
          %v1414 = vld [vmem:[%s564 + $0x58] sm:$0xf]
          %v1415 = vld [vmem:[%s564 + $0x5c] sm:$0xf]
          %v1416 = vld [vmem:[%s564 + $0x60] sm:$0xf]
          %v1417 = vld [vmem:[%s564 + $0x64] sm:$0xf]
          %v1418 = vld [vmem:[%s564 + $0x68] sm:$0xf]
          %v1419 = vld [vmem:[%s564 + $0x6c] sm:$0xf]
          %v1420 = vld [vmem:[%s564 + $0x70] sm:$0xf]
          %v1421 = vld [vmem:[%s564 + $0x74] sm:$0xf]
          %v1422 = vld [vmem:[%s564 + $0x78] sm:$0xf]
          %v1423 = vld [vmem:[%s564 + $0x7c] sm:$0xf]
          %v1456 = vunpack.c.l.b16 %v1392
          %v1457 = vunpack.c.l.b16 %v1393
          %v1458 = vunpack.c.l.b16 %v1394
          %v1459 = vunpack.c.l.b16 %v1395
          %v1460 = vunpack.c.l.b16 %v1396
          %v1461 = vunpack.c.l.b16 %v1397
          %v1462 = vunpack.c.l.b16 %v1398
          %v1463 = vunpack.c.l.b16 %v1399
          %v1464 = vunpack.c.l.b16 %v1400
          %v1465 = vunpack.c.l.b16 %v1401
          %v1466 = vunpack.c.l.b16 %v1402
          %v1467 = vunpack.c.l.b16 %v1403
          %v1468 = vunpack.c.l.b16 %v1404
          %v1469 = vunpack.c.l.b16 %v1405
          %v1470 = vunpack.c.l.b16 %v1406
          %v1471 = vunpack.c.l.b16 %v1407
          %v1472 = vunpack.c.l.b16 %v1408
          %v1473 = vunpack.c.l.b16 %v1409
          %v1474 = vunpack.c.l.b16 %v1410
          %v1475 = vunpack.c.l.b16 %v1411
          %v1476 = vunpack.c.l.b16 %v1412
          %v1477 = vunpack.c.l.b16 %v1413
          %v1478 = vunpack.c.l.b16 %v1414
          %v1479 = vunpack.c.l.b16 %v1415
          %v1480 = vunpack.c.l.b16 %v1416
          %v1481 = vunpack.c.l.b16 %v1417
          %v1482 = vunpack.c.l.b16 %v1418
          %v1483 = vunpack.c.l.b16 %v1419
          %v1484 = vunpack.c.l.b16 %v1420
          %v1485 = vunpack.c.l.b16 %v1421
          %v1486 = vunpack.c.l.b16 %v1422
          %v1487 = vunpack.c.l.b16 %v1423
          %v1488 = vpack.c.b16 %v1457, %v1456
          %v1489 = vpack.c.b16 %v1459, %v1458
          %v1490 = vpack.c.b16 %v1461, %v1460
          %v1491 = vpack.c.b16 %v1463, %v1462
          %v1492 = vpack.c.b16 %v1465, %v1464
          %v1493 = vpack.c.b16 %v1467, %v1466
          %v1494 = vpack.c.b16 %v1469, %v1468
          %v1495 = vpack.c.b16 %v1471, %v1470
          %v1496 = vpack.c.b16 %v1473, %v1472
          %v1497 = vpack.c.b16 %v1475, %v1474
          %v1498 = vpack.c.b16 %v1477, %v1476
          %v1499 = vpack.c.b16 %v1479, %v1478
          %v1500 = vpack.c.b16 %v1481, %v1480
          %v1501 = vpack.c.b16 %v1483, %v1482
          %v1502 = vpack.c.b16 %v1485, %v1484
          %v1503 = vpack.c.b16 %v1487, %v1486
          %1520 = vmatpush.bf16.msra.mxu0 %v1495
          %1521 = vmatpush.bf16.msra.mxu0 %v1494
          %1522 = vmatpush.bf16.msra.mxu0 %v1493
          %1523 = vmatpush.bf16.msra.mxu0 %v1492
          %1524 = vmatpush.bf16.msra.mxu0 %v1491
          %1525 = vmatpush.bf16.msra.mxu0 %v1490
          %1526 = vmatpush.bf16.msra.mxu0 %v1489
          %1527 = vmatpush.bf16.msra.mxu0 %v1488
          %1528 = vmatmul.bf16.gmra.mxu0 %v1390
          %v1529 = vpop.f32.mrf.mxu0
          %v1530 = vadd.f32 0.0, %v1529
          %v1531 = vpop.f32.mrf.mxu0
          %v1532 = vadd.f32 0.0, %v1531
          %1533 = vdwg.mxu0
          %1534 = vmatpush.bf16.msra.mxu0 %v1503
          %1535 = vmatpush.bf16.msra.mxu0 %v1502
          %1536 = vmatpush.bf16.msra.mxu0 %v1501
          %1537 = vmatpush.bf16.msra.mxu0 %v1500
          %1538 = vmatpush.bf16.msra.mxu0 %v1499
          %1539 = vmatpush.bf16.msra.mxu0 %v1498
          %1540 = vmatpush.bf16.msra.mxu0 %v1497
          %1541 = vmatpush.bf16.msra.mxu0 %v1496
          %1542 = vmatmul.bf16.gmra.mxu0 %v1391
          %v1543 = vpop.f32.mrf.mxu0
          %v1544 = vadd.f32 %v1530, %v1543
          %v1545 = vpop.f32.mrf.mxu0
          %v1546 = vadd.f32 %v1532, %v1545
          %1547 = vdwg.mxu0
          %v1548 = vadd.f32 %v1388, %v1544
          %v1549 = vadd.f32 %v1389, %v1546
          %1550 = vst [vmem:[%s13] sm:$0xff] %v1548
          %1551 = vst [vmem:[%s13 + $0x8] sm:$0xff] %v1549
        $region92: #{siamese_arm_forward.3} parent=67 // pred_fallthru
          _
        // Predicated region
        $region93: #{siamese_arm_forward.3} parent=67 // pred_check
          %p1552 = pneg %p372
        $region94: #{siamese_arm_forward.3} parent=67 // pred_check_branch
          %1554 = sbr.rel (%p1552) target = $region96
        $region95: #{siamese_arm_forward.3} parent=67 // pred_region
          _
        $region96: #{siamese_arm_forward.3} parent=67 // pred_fallthru
          _
        // Predicated region
        $region97: #{siamese_arm_forward.3} parent=67 // pred_check
          %p1555 = pneg %p393
        $region98: #{siamese_arm_forward.3} parent=67 // pred_check_branch
          %1557 = sbr.rel (%p1555) target = $region100
        $region99: #{siamese_arm_forward.3} parent=67 // pred_region
          _
        $region100: #{siamese_arm_forward.3} parent=67 // pred_fallthru
          _
        // Predicated region
        $region101: #{siamese_arm_forward.3} parent=67 // pred_check
          %p1558 = pneg %p372
        $region102: #{siamese_arm_forward.3} parent=67 // pred_check_branch
          %1560 = sbr.rel (%p1558) target = $region104
        $region103: #{siamese_arm_forward.3} parent=67 // pred_region
          _
        $region104: #{siamese_arm_forward.3} parent=67 // pred_fallthru
          _
        // Predicated region
        $region105: #{siamese_arm_forward.3} parent=67 // pred_check
          %p1561 = pneg %p393
        $region106: #{siamese_arm_forward.3} parent=67 // pred_check_branch
          %1563 = sbr.rel (%p1561) target = $region108
        $region107: #{siamese_arm_forward.3} parent=67 // pred_region
          _
        $region108: #{siamese_arm_forward.3} parent=67 // pred_fallthru
          _
      $region68: #{siamese_arm_forward.3} parent=5 // pred_fallthru
        _
      %p1564 = scmp.le.s32.totalorder 2, %s26
      // Predicated region
      $region109: #{siamese_arm_forward.3} parent=5 // pred_check
        %p1565 = pneg %p1564
      $region110: #{siamese_arm_forward.3} parent=5 // pred_check_branch
        %1567 = sbr.rel (%p1565) target = $region112
      $region111: #{siamese_arm_forward.3} parent=5 // pred_region
        %s1568 = ssub.s32 %s26, 2
      $region112: #{siamese_arm_forward.3} parent=5 // pred_fallthru
        _
    $region6: #{siamese_arm_forward.3} parent=1 // loop_footer
      %s30 = sadd.s32 1, %s26
    $region7: #{siamese_arm_forward.3} parent=1 // loop_footer_branch
      %25 = sbr.rel target = $region3
    $region8: #{siamese_arm_forward.3} parent=1 // loop_exit
      _
    %1569 = vsyncpa [#allocation3], 1
    %s1570 = scalar_lea.sflag [#allocation3], 1
    %1571 = vsyncpa %s1570, 1
    %1572 = vsyncpa [#allocation5], 1
    %s1573 = scalar_lea.sflag [#allocation5], 1
    %1574 = vsyncpa %s1573, 1

</llo_original>
